<compile_context>
chip_gen: v5e
topology: v5e:2x2
jax: 0.10.0
libtpu: 0.0.40
codegen_flags: <defaults>
</compile_context>

<pallas_src>
import functools

import jax
import jax.numpy as jnp
from jax import lax
from jax.experimental import pallas as pl
from jax.experimental.pallas import tpu as pltpu


# ----------------------------- static net geometry --------------------------
H_IN, W_IN = 30, 45          # input spatial size implied by the 192-flatten
K1, S1 = 6, 3                # conv1 kernel / stride
K2, S2 = 3, 2                # conv2 kernel / stride
C1, C2 = 8, 8                # conv output channels
H1 = (H_IN - K1) // S1 + 1   # 9
W1 = (W_IN - K1) // S1 + 1   # 14
H2 = (H1 - K2) // S2 + 1     # 4
W2 = (W1 - K2) // S2 + 1     # 6
W1C = W1 * C1                # 112  (w, co) flattened, co minor
W1C_PAD = 128                # lane-dense padding of the y1 feature axis
W2C = W2 * C2                # 48   (w2, co) flattened, co minor
FC_H = 128                   # fc1 hidden size
FLAT = C2 * H2 * W2          # 192


# ----------------------------- Pallas kernel --------------------------------
def _net_kernel(x_ref, a1_ref, b1_ref, a2_ref, b2_ref,
                wf1_ref, bf1_ref, wf2_ref, bf2_ref,
                out_ref, y1_ref):
    """Whole forward pass for a small batch, fully resident in VMEM.

    x_ref  : [B*30, 45]      input rows (batch-major)
    a1_ref : [6, 45, 128]    conv1 tap-row matrices (W-selection folded in)
    b1_ref : [1, 128]        conv1 bias tiled over w positions (padded)
    a2_ref : [3, 128, 48]    conv2 tap-row matrices
    b2_ref : [1, 48]         conv2 bias tiled over w2 positions
    wf1_ref: [48, 512]       fc1 weights, NCHW-flatten folded, h2-blocked cols
    bf1_ref: [1, 128]
    wf2_ref: [128, A]
    bf2_ref: [1, A]
    out_ref: [B, A]
    y1_ref : [B*9, 128]      conv1 activations scratch (lane-dense)
    """
    B = out_ref.shape[0]
    f32 = jnp.float32

    # ---- conv1 + ReLU:  y1[b*9+h, w*8+co] ----
    for b in range(B):
        acc = jnp.zeros((H1, W1C_PAD), f32)
        for i in range(K1):
            # rows 3h + i of image b  -> [9, 45]  (strided VMEM read)
            rows = x_ref[pl.ds(H_IN * b + i, H1, S1), :]
            acc = acc + jnp.dot(rows, a1_ref[i], preferred_element_type=f32)
        y1_ref[pl.ds(H1 * b, H1), :] = jnp.maximum(acc + b1_ref[...], 0.0)

    # ---- conv2 + ReLU, fc1 (flatten folded) + ReLU, fc2  (per image) ----
    for b in range(B):
        acc = jnp.zeros((H2, W2C), f32)
        for i in range(K2):
            # rows 2*h2 + i of image b's conv1 output -> [4, 128]
            rows = y1_ref[pl.ds(H1 * b + i, H2, S2), :]
            acc = acc + jnp.dot(rows, a2_ref[i], preferred_element_type=f32)
        y2 = jnp.maximum(acc + b2_ref[...], 0.0)                  # [4, 48]

        # fc1: one lane-dense dot, then sum the h2-blocks (flatten folded).
        p = jnp.dot(y2, wf1_ref[...], preferred_element_type=f32)  # [4, 512]
        h = p[0:1, 0:FC_H]
        for h2 in range(1, H2):
            h = h + p[h2:h2 + 1, FC_H * h2:FC_H * (h2 + 1)]
        h = jnp.maximum(h + bf1_ref[...], 0.0)                     # [1, 128]

        o = jnp.dot(h, wf2_ref[...], preferred_element_type=f32) + bf2_ref[...]
        out_ref[pl.ds(b, 1), :] = o.astype(out_ref.dtype)


# ------------------------- parameter folding (one-time) ---------------------
def prepare_params(params):
    """Fold conv taps, the NCHW flatten permutation, and biases into the
    matrices the fused kernel consumes. Run once, outside the forward."""
    # conv1: A1[i, c, w*8+co] = conv1_w[co, 0, i, c - 3w]  (if 0 <= c-3w <= 5)
    w1k = params["conv1_w"][:, 0, :, :]                        # [co, i, j]
    c = jnp.arange(W_IN)[:, None]
    w = jnp.arange(W1)[None, :]
    j = c - S1 * w
    m1 = ((j >= 0) & (j < K1)).astype(jnp.float32)             # [45, 14]
    g1 = w1k[:, :, jnp.clip(j, 0, K1 - 1)]                     # [8, 6, 45, 14]
    a1 = jnp.transpose(g1, (1, 2, 3, 0)) * m1[None, :, :, None]  # [6,45,14,8]
    a1 = a1.reshape(K1, W_IN, W1C)
    a1 = jnp.pad(a1, ((0, 0), (0, 0), (0, W1C_PAD - W1C)))     # [6, 45, 128]
    b1 = jnp.pad(jnp.tile(params["conv1_b"], W1), (0, W1C_PAD - W1C))[None]

    # conv2: A2[i, w*8+ci, w2*8+co] = conv2_w[co, ci, i, w - 2*w2]
    c2w = params["conv2_w"]                                     # [co, ci, i, j]
    pos = jnp.arange(W1)[:, None]
    w2 = jnp.arange(W2)[None, :]
    j2 = pos - S2 * w2
    m2 = ((j2 >= 0) & (j2 < K2)).astype(jnp.float32)            # [14, 6]
    g2 = c2w[:, :, :, jnp.clip(j2, 0, K2 - 1)]                  # [8,8,3,14,6]
    a2 = jnp.transpose(g2, (2, 3, 1, 4, 0)) * m2[None, :, None, :, None]
    a2 = a2.reshape(K2, W1C, W2C)                               # [3, 112, 48]
    a2 = jnp.pad(a2, ((0, 0), (0, W1C_PAD - W1C), (0, 0)))      # [3, 128, 48]
    b2 = jnp.tile(params["conv2_b"], W2)[None]                  # [1, 48]

    # fc1 with PyTorch's NCHW flatten folded in:
    #   Wf1[h2, w2*8+co, n] = fc1_w[n, co*24 + h2*6 + w2]
    f1 = params["fc1_w"].reshape(FC_H, C2, H2, W2)              # (n, co, h2, w2)
    wf1 = jnp.transpose(f1, (2, 3, 1, 0)).reshape(H2, W2C, FC_H)
    wf1 = jnp.transpose(wf1, (1, 0, 2)).reshape(W2C, H2 * FC_H)  # [48, 512]
    bf1 = params["fc1_b"][None]                                  # [1, 128]

    wf2 = params["fc2_w"].T                                      # [128, A]
    bf2 = params["fc2_b"][None]                                  # [1, A]
    return dict(a1=a1, b1=b1, a2=a2, b2=b2, wf1=wf1, bf1=bf1, wf2=wf2, bf2=bf2)


# --------------------------------- forward ----------------------------------
@functools.partial(jax.jit)
def net_forward(x_nchw, prep):
    B = x_nchw.shape[0]
    n_act = prep["wf2"].shape[1]
    x = x_nchw.reshape(B * H_IN, W_IN).astype(jnp.float32)   # C=1: pure relabel
    return pl.pallas_call(
        _net_kernel,
        out_shape=jax.ShapeDtypeStruct((B, n_act), jnp.float32),
        in_specs=[pl.BlockSpec(memory_space=pltpu.MemorySpace.VMEM)] * 9,
        out_specs=pl.BlockSpec(memory_space=pltpu.MemorySpace.VMEM),
        scratch_shapes=[pltpu.VMEM((B * H1, W1C_PAD), jnp.float32)],
    )(x, prep["a1"], prep["b1"], prep["a2"], prep["b2"],
      prep["wf1"], prep["bf1"], prep["wf2"], prep["bf2"])


# ------------------------------ init & reference ----------------------------
def init_params(key, n_actions):
    ks = jax.random.split(key, 8)
    s = 0.1
    return {
        "conv1_w": s * jax.random.normal(ks[0], (C1, 1, K1, K1), jnp.float32),   # OIHW
        "conv1_b": s * jax.random.normal(ks[1], (C1,), jnp.float32),
        "conv2_w": s * jax.random.normal(ks[2], (C2, C1, K2, K2), jnp.float32),  # OIHW
        "conv2_b": s * jax.random.normal(ks[3], (C2,), jnp.float32),
        "fc1_w": s * jax.random.normal(ks[4], (FC_H, FLAT), jnp.float32),        # (out, in)
        "fc1_b": s * jax.random.normal(ks[5], (FC_H,), jnp.float32),
        "fc2_w": s * jax.random.normal(ks[6], (n_actions, FC_H), jnp.float32),   # (out, in)
        "fc2_b": s * jax.random.normal(ks[7], (n_actions,), jnp.float32),
    }


def net_forward_ref(x_nchw, params):
    """Pure-JAX reference of the PyTorch forward (for validation)."""
    dn = ("NCHW", "OIHW", "NCHW")
    y = lax.conv_general_dilated(x_nchw, params["conv1_w"], (S1, S1), "VALID",
                                 dimension_numbers=dn)
    y = jax.nn.relu(y + params["conv1_b"][None, :, None, None])
    y = lax.conv_general_dilated(y, params["conv2_w"], (S2, S2), "VALID",
                                 dimension_numbers=dn)
    y = jax.nn.relu(y + params["conv2_b"][None, :, None, None])
    y = y.reshape(y.shape[0], -1)
    y = jax.nn.relu(y @ params["fc1_w"].T + params["fc1_b"])
    return y @ params["fc2_w"].T + params["fc2_b"]


if __name__ == "__main__":
    n_actions = 8
    key = jax.random.PRNGKey(0)
    k_x, k_p = jax.random.split(key)

    # 192-feature flatten implies a (1, 30, 45) input (ViZDoom resolution):
    # conv1 -> (8, 9, 14), conv2 -> (8, 4, 6), 8*4*6 = 192.
    x = jax.random.normal(k_x, (2, 1, H_IN, W_IN), jnp.float32)
    params = init_params(k_p, n_actions)
    prep = prepare_params(params)          # one-time weight folding

    out = jax.block_until_ready(net_forward(x, prep))
    ref = jax.block_until_ready(net_forward_ref(x, params))

    assert out.shape == (2, n_actions)
    assert jnp.allclose(out, ref, rtol=1e-4, atol=1e-4), float(jnp.max(jnp.abs(out - ref)))
    print("KERNEL_OK")
</pallas_src>

<mosaic_0001>
module attributes {stable_mosaic.version = 11 : i64} {
  func.func @_net_kernel(%arg0: memref<60x45xf32, #tpu.memory_space<vmem>>, %arg1: memref<6x45x128xf32, #tpu.memory_space<vmem>>, %arg2: memref<1x128xf32, #tpu.memory_space<vmem>>, %arg3: memref<3x128x48xf32, #tpu.memory_space<vmem>>, %arg4: memref<1x48xf32, #tpu.memory_space<vmem>>, %arg5: memref<48x512xf32, #tpu.memory_space<vmem>>, %arg6: memref<1x128xf32, #tpu.memory_space<vmem>>, %arg7: memref<128x8xf32, #tpu.memory_space<vmem>>, %arg8: memref<1x8xf32, #tpu.memory_space<vmem>>, %arg9: memref<2x8xf32, #tpu.memory_space<vmem>>, %arg10: memref<18x128xf32, #tpu.memory_space<vmem>>) attributes {dimension_semantics = [], scalar_prefetch = 0 : i64, scratch_operands = 1 : i64, tpu.core_type = #tpu.core_type<tc>} {
    %cst = arith.constant 0.000000e+00 : f32
    %0 = vector.broadcast %cst : f32 to vector<9x128xf32>
    %c0 = arith.constant 0 : index
    %c0_0 = arith.constant 0 : index
    %1 = tpu.strided_load %arg0[%c0, %c0_0] {strides = array<i32: 3, 1>} : memref<60x45xf32, #tpu.memory_space<vmem>>, vector<9x45xf32>
    %c0_1 = arith.constant 0 : index
    %c0_2 = arith.constant 0 : index
    %c0_3 = arith.constant 0 : index
    %2 = vector.load %arg1[%c0_1, %c0_2, %c0_3] : memref<6x45x128xf32, #tpu.memory_space<vmem>>, vector<1x45x128xf32>
    %3 = vector.shape_cast %2 : vector<1x45x128xf32> to vector<45x128xf32>
    %cst_4 = arith.constant dense<0.000000e+00> : vector<9x128xf32>
    %4 = tpu.matmul %1, %3, %cst_4 {dimension_numbers = #tpu.dot_dimension_numbers<[1], [0], [0], [1], [0, 0, 1, 1], [], []>} : vector<9x45xf32>, vector<45x128xf32>, vector<9x128xf32> -> vector<9x128xf32>
    %5 = arith.addf %0, %4 : vector<9x128xf32>
    %c1 = arith.constant 1 : index
    %c0_5 = arith.constant 0 : index
    %6 = tpu.strided_load %arg0[%c1, %c0_5] {strides = array<i32: 3, 1>} : memref<60x45xf32, #tpu.memory_space<vmem>>, vector<9x45xf32>
    %c1_6 = arith.constant 1 : index
    %c0_7 = arith.constant 0 : index
    %c0_8 = arith.constant 0 : index
    %7 = vector.load %arg1[%c1_6, %c0_7, %c0_8] : memref<6x45x128xf32, #tpu.memory_space<vmem>>, vector<1x45x128xf32>
    %8 = vector.shape_cast %7 : vector<1x45x128xf32> to vector<45x128xf32>
    %cst_9 = arith.constant dense<0.000000e+00> : vector<9x128xf32>
    %9 = tpu.matmul %6, %8, %cst_9 {dimension_numbers = #tpu.dot_dimension_numbers<[1], [0], [0], [1], [0, 0, 1, 1], [], []>} : vector<9x45xf32>, vector<45x128xf32>, vector<9x128xf32> -> vector<9x128xf32>
    %10 = arith.addf %5, %9 : vector<9x128xf32>
    %c2 = arith.constant 2 : index
    %c0_10 = arith.constant 0 : index
    %11 = tpu.strided_load %arg0[%c2, %c0_10] {strides = array<i32: 3, 1>} : memref<60x45xf32, #tpu.memory_space<vmem>>, vector<9x45xf32>
    %c2_11 = arith.constant 2 : index
    %c0_12 = arith.constant 0 : index
    %c0_13 = arith.constant 0 : index
    %12 = vector.load %arg1[%c2_11, %c0_12, %c0_13] : memref<6x45x128xf32, #tpu.memory_space<vmem>>, vector<1x45x128xf32>
    %13 = vector.shape_cast %12 : vector<1x45x128xf32> to vector<45x128xf32>
    %cst_14 = arith.constant dense<0.000000e+00> : vector<9x128xf32>
    %14 = tpu.matmul %11, %13, %cst_14 {dimension_numbers = #tpu.dot_dimension_numbers<[1], [0], [0], [1], [0, 0, 1, 1], [], []>} : vector<9x45xf32>, vector<45x128xf32>, vector<9x128xf32> -> vector<9x128xf32>
    %15 = arith.addf %10, %14 : vector<9x128xf32>
    %c3 = arith.constant 3 : index
    %c0_15 = arith.constant 0 : index
    %16 = tpu.strided_load %arg0[%c3, %c0_15] {strides = array<i32: 3, 1>} : memref<60x45xf32, #tpu.memory_space<vmem>>, vector<9x45xf32>
    %c3_16 = arith.constant 3 : index
    %c0_17 = arith.constant 0 : index
    %c0_18 = arith.constant 0 : index
    %17 = vector.load %arg1[%c3_16, %c0_17, %c0_18] : memref<6x45x128xf32, #tpu.memory_space<vmem>>, vector<1x45x128xf32>
    %18 = vector.shape_cast %17 : vector<1x45x128xf32> to vector<45x128xf32>
    %cst_19 = arith.constant dense<0.000000e+00> : vector<9x128xf32>
    %19 = tpu.matmul %16, %18, %cst_19 {dimension_numbers = #tpu.dot_dimension_numbers<[1], [0], [0], [1], [0, 0, 1, 1], [], []>} : vector<9x45xf32>, vector<45x128xf32>, vector<9x128xf32> -> vector<9x128xf32>
    %20 = arith.addf %15, %19 : vector<9x128xf32>
    %c4 = arith.constant 4 : index
    %c0_20 = arith.constant 0 : index
    %21 = tpu.strided_load %arg0[%c4, %c0_20] {strides = array<i32: 3, 1>} : memref<60x45xf32, #tpu.memory_space<vmem>>, vector<9x45xf32>
    %c4_21 = arith.constant 4 : index
    %c0_22 = arith.constant 0 : index
    %c0_23 = arith.constant 0 : index
    %22 = vector.load %arg1[%c4_21, %c0_22, %c0_23] : memref<6x45x128xf32, #tpu.memory_space<vmem>>, vector<1x45x128xf32>
    %23 = vector.shape_cast %22 : vector<1x45x128xf32> to vector<45x128xf32>
    %cst_24 = arith.constant dense<0.000000e+00> : vector<9x128xf32>
    %24 = tpu.matmul %21, %23, %cst_24 {dimension_numbers = #tpu.dot_dimension_numbers<[1], [0], [0], [1], [0, 0, 1, 1], [], []>} : vector<9x45xf32>, vector<45x128xf32>, vector<9x128xf32> -> vector<9x128xf32>
    %25 = arith.addf %20, %24 : vector<9x128xf32>
    %c5 = arith.constant 5 : index
    %c0_25 = arith.constant 0 : index
    %26 = tpu.strided_load %arg0[%c5, %c0_25] {strides = array<i32: 3, 1>} : memref<60x45xf32, #tpu.memory_space<vmem>>, vector<9x45xf32>
    %c5_26 = arith.constant 5 : index
    %c0_27 = arith.constant 0 : index
    %c0_28 = arith.constant 0 : index
    %27 = vector.load %arg1[%c5_26, %c0_27, %c0_28] : memref<6x45x128xf32, #tpu.memory_space<vmem>>, vector<1x45x128xf32>
    %28 = vector.shape_cast %27 : vector<1x45x128xf32> to vector<45x128xf32>
    %cst_29 = arith.constant dense<0.000000e+00> : vector<9x128xf32>
    %29 = tpu.matmul %26, %28, %cst_29 {dimension_numbers = #tpu.dot_dimension_numbers<[1], [0], [0], [1], [0, 0, 1, 1], [], []>} : vector<9x45xf32>, vector<45x128xf32>, vector<9x128xf32> -> vector<9x128xf32>
    %30 = arith.addf %25, %29 : vector<9x128xf32>
    %c0_30 = arith.constant 0 : index
    %c0_31 = arith.constant 0 : index
    %31 = vector.load %arg2[%c0_30, %c0_31] : memref<1x128xf32, #tpu.memory_space<vmem>>, vector<1x128xf32>
    %32 = vector.broadcast %31 : vector<1x128xf32> to vector<9x128xf32>
    %33 = arith.addf %30, %32 : vector<9x128xf32>
    %cst_32 = arith.constant 0.000000e+00 : f32
    %34 = vector.broadcast %cst_32 : f32 to vector<9x128xf32>
    %35 = arith.maximumf %33, %34 : vector<9x128xf32>
    %c0_33 = arith.constant 0 : index
    %c0_34 = arith.constant 0 : index
    %36 = vector.load %arg10[%c0_33, %c0_34] : memref<18x128xf32, #tpu.memory_space<vmem>>, vector<9x128xf32>
    tpu.vector_store %arg10[%c0_33, %c0_34], %35 {strides = array<i32>} : memref<18x128xf32, #tpu.memory_space<vmem>>, vector<9x128xf32>,
    %cst_35 = arith.constant 0.000000e+00 : f32
    %37 = vector.broadcast %cst_35 : f32 to vector<9x128xf32>
    %c30 = arith.constant 30 : index
    %c0_36 = arith.constant 0 : index
    %38 = tpu.strided_load %arg0[%c30, %c0_36] {strides = array<i32: 3, 1>} : memref<60x45xf32, #tpu.memory_space<vmem>>, vector<9x45xf32>
    %c0_37 = arith.constant 0 : index
    %c0_38 = arith.constant 0 : index
    %c0_39 = arith.constant 0 : index
    %39 = vector.load %arg1[%c0_37, %c0_38, %c0_39] : memref<6x45x128xf32, #tpu.memory_space<vmem>>, vector<1x45x128xf32>
    %40 = vector.shape_cast %39 : vector<1x45x128xf32> to vector<45x128xf32>
    %cst_40 = arith.constant dense<0.000000e+00> : vector<9x128xf32>
    %41 = tpu.matmul %38, %40, %cst_40 {dimension_numbers = #tpu.dot_dimension_numbers<[1], [0], [0], [1], [0, 0, 1, 1], [], []>} : vector<9x45xf32>, vector<45x128xf32>, vector<9x128xf32> -> vector<9x128xf32>
    %42 = arith.addf %37, %41 : vector<9x128xf32>
    %c31 = arith.constant 31 : index
    %c0_41 = arith.constant 0 : index
    %43 = tpu.strided_load %arg0[%c31, %c0_41] {strides = array<i32: 3, 1>} : memref<60x45xf32, #tpu.memory_space<vmem>>, vector<9x45xf32>
    %c1_42 = arith.constant 1 : index
    %c0_43 = arith.constant 0 : index
    %c0_44 = arith.constant 0 : index
    %44 = vector.load %arg1[%c1_42, %c0_43, %c0_44] : memref<6x45x128xf32, #tpu.memory_space<vmem>>, vector<1x45x128xf32>
    %45 = vector.shape_cast %44 : vector<1x45x128xf32> to vector<45x128xf32>
    %cst_45 = arith.constant dense<0.000000e+00> : vector<9x128xf32>
    %46 = tpu.matmul %43, %45, %cst_45 {dimension_numbers = #tpu.dot_dimension_numbers<[1], [0], [0], [1], [0, 0, 1, 1], [], []>} : vector<9x45xf32>, vector<45x128xf32>, vector<9x128xf32> -> vector<9x128xf32>
    %47 = arith.addf %42, %46 : vector<9x128xf32>
    %c32 = arith.constant 32 : index
    %c0_46 = arith.constant 0 : index
    %48 = tpu.strided_load %arg0[%c32, %c0_46] {strides = array<i32: 3, 1>} : memref<60x45xf32, #tpu.memory_space<vmem>>, vector<9x45xf32>
    %c2_47 = arith.constant 2 : index
    %c0_48 = arith.constant 0 : index
    %c0_49 = arith.constant 0 : index
    %49 = vector.load %arg1[%c2_47, %c0_48, %c0_49] : memref<6x45x128xf32, #tpu.memory_space<vmem>>, vector<1x45x128xf32>
    %50 = vector.shape_cast %49 : vector<1x45x128xf32> to vector<45x128xf32>
    %cst_50 = arith.constant dense<0.000000e+00> : vector<9x128xf32>
    %51 = tpu.matmul %48, %50, %cst_50 {dimension_numbers = #tpu.dot_dimension_numbers<[1], [0], [0], [1], [0, 0, 1, 1], [], []>} : vector<9x45xf32>, vector<45x128xf32>, vector<9x128xf32> -> vector<9x128xf32>
    %52 = arith.addf %47, %51 : vector<9x128xf32>
    %c33 = arith.constant 33 : index
    %c0_51 = arith.constant 0 : index
    %53 = tpu.strided_load %arg0[%c33, %c0_51] {strides = array<i32: 3, 1>} : memref<60x45xf32, #tpu.memory_space<vmem>>, vector<9x45xf32>
    %c3_52 = arith.constant 3 : index
    %c0_53 = arith.constant 0 : index
    %c0_54 = arith.constant 0 : index
    %54 = vector.load %arg1[%c3_52, %c0_53, %c0_54] : memref<6x45x128xf32, #tpu.memory_space<vmem>>, vector<1x45x128xf32>
    %55 = vector.shape_cast %54 : vector<1x45x128xf32> to vector<45x128xf32>
    %cst_55 = arith.constant dense<0.000000e+00> : vector<9x128xf32>
    %56 = tpu.matmul %53, %55, %cst_55 {dimension_numbers = #tpu.dot_dimension_numbers<[1], [0], [0], [1], [0, 0, 1, 1], [], []>} : vector<9x45xf32>, vector<45x128xf32>, vector<9x128xf32> -> vector<9x128xf32>
    %57 = arith.addf %52, %56 : vector<9x128xf32>
    %c34 = arith.constant 34 : index
    %c0_56 = arith.constant 0 : index
    %58 = tpu.strided_load %arg0[%c34, %c0_56] {strides = array<i32: 3, 1>} : memref<60x45xf32, #tpu.memory_space<vmem>>, vector<9x45xf32>
    %c4_57 = arith.constant 4 : index
    %c0_58 = arith.constant 0 : index
    %c0_59 = arith.constant 0 : index
    %59 = vector.load %arg1[%c4_57, %c0_58, %c0_59] : memref<6x45x128xf32, #tpu.memory_space<vmem>>, vector<1x45x128xf32>
    %60 = vector.shape_cast %59 : vector<1x45x128xf32> to vector<45x128xf32>
    %cst_60 = arith.constant dense<0.000000e+00> : vector<9x128xf32>
    %61 = tpu.matmul %58, %60, %cst_60 {dimension_numbers = #tpu.dot_dimension_numbers<[1], [0], [0], [1], [0, 0, 1, 1], [], []>} : vector<9x45xf32>, vector<45x128xf32>, vector<9x128xf32> -> vector<9x128xf32>
    %62 = arith.addf %57, %61 : vector<9x128xf32>
    %c35 = arith.constant 35 : index
    %c0_61 = arith.constant 0 : index
    %63 = tpu.strided_load %arg0[%c35, %c0_61] {strides = array<i32: 3, 1>} : memref<60x45xf32, #tpu.memory_space<vmem>>, vector<9x45xf32>
    %c5_62 = arith.constant 5 : index
    %c0_63 = arith.constant 0 : index
    %c0_64 = arith.constant 0 : index
    %64 = vector.load %arg1[%c5_62, %c0_63, %c0_64] : memref<6x45x128xf32, #tpu.memory_space<vmem>>, vector<1x45x128xf32>
    %65 = vector.shape_cast %64 : vector<1x45x128xf32> to vector<45x128xf32>
    %cst_65 = arith.constant dense<0.000000e+00> : vector<9x128xf32>
    %66 = tpu.matmul %63, %65, %cst_65 {dimension_numbers = #tpu.dot_dimension_numbers<[1], [0], [0], [1], [0, 0, 1, 1], [], []>} : vector<9x45xf32>, vector<45x128xf32>, vector<9x128xf32> -> vector<9x128xf32>
    %67 = arith.addf %62, %66 : vector<9x128xf32>
    %c0_66 = arith.constant 0 : index
    %c0_67 = arith.constant 0 : index
    %68 = vector.load %arg2[%c0_66, %c0_67] : memref<1x128xf32, #tpu.memory_space<vmem>>, vector<1x128xf32>
    %69 = vector.broadcast %68 : vector<1x128xf32> to vector<9x128xf32>
    %70 = arith.addf %67, %69 : vector<9x128xf32>
    %cst_68 = arith.constant 0.000000e+00 : f32
    %71 = vector.broadcast %cst_68 : f32 to vector<9x128xf32>
    %72 = arith.maximumf %70, %71 : vector<9x128xf32>
    %c9 = arith.constant 9 : index
    %c0_69 = arith.constant 0 : index
    %73 = vector.load %arg10[%c9, %c0_69] : memref<18x128xf32, #tpu.memory_space<vmem>>, vector<9x128xf32>
    tpu.vector_store %arg10[%c9, %c0_69], %72 {strides = array<i32>} : memref<18x128xf32, #tpu.memory_space<vmem>>, vector<9x128xf32>,
    %cst_70 = arith.constant 0.000000e+00 : f32
    %74 = vector.broadcast %cst_70 : f32 to vector<4x48xf32>
    %c0_71 = arith.constant 0 : index
    %c0_72 = arith.constant 0 : index
    %75 = tpu.strided_load %arg10[%c0_71, %c0_72] {strides = array<i32: 2, 1>} : memref<18x128xf32, #tpu.memory_space<vmem>>, vector<4x128xf32>
    %c0_73 = arith.constant 0 : index
    %c0_74 = arith.constant 0 : index
    %c0_75 = arith.constant 0 : index
    %76 = vector.load %arg3[%c0_73, %c0_74, %c0_75] : memref<3x128x48xf32, #tpu.memory_space<vmem>>, vector<1x128x48xf32>
    %77 = vector.shape_cast %76 : vector<1x128x48xf32> to vector<128x48xf32>
    %cst_76 = arith.constant dense<0.000000e+00> : vector<4x48xf32>
    %78 = tpu.matmul %75, %77, %cst_76 {dimension_numbers = #tpu.dot_dimension_numbers<[1], [0], [0], [1], [0, 0, 1, 1], [], []>} : vector<4x128xf32>, vector<128x48xf32>, vector<4x48xf32> -> vector<4x48xf32>
    %79 = arith.addf %74, %78 : vector<4x48xf32>
    %c1_77 = arith.constant 1 : index
    %c0_78 = arith.constant 0 : index
    %80 = tpu.strided_load %arg10[%c1_77, %c0_78] {strides = array<i32: 2, 1>} : memref<18x128xf32, #tpu.memory_space<vmem>>, vector<4x128xf32>
    %c1_79 = arith.constant 1 : index
    %c0_80 = arith.constant 0 : index
    %c0_81 = arith.constant 0 : index
    %81 = vector.load %arg3[%c1_79, %c0_80, %c0_81] : memref<3x128x48xf32, #tpu.memory_space<vmem>>, vector<1x128x48xf32>
    %82 = vector.shape_cast %81 : vector<1x128x48xf32> to vector<128x48xf32>
    %cst_82 = arith.constant dense<0.000000e+00> : vector<4x48xf32>
    %83 = tpu.matmul %80, %82, %cst_82 {dimension_numbers = #tpu.dot_dimension_numbers<[1], [0], [0], [1], [0, 0, 1, 1], [], []>} : vector<4x128xf32>, vector<128x48xf32>, vector<4x48xf32> -> vector<4x48xf32>
    %84 = arith.addf %79, %83 : vector<4x48xf32>
    %c2_83 = arith.constant 2 : index
    %c0_84 = arith.constant 0 : index
    %85 = tpu.strided_load %arg10[%c2_83, %c0_84] {strides = array<i32: 2, 1>} : memref<18x128xf32, #tpu.memory_space<vmem>>, vector<4x128xf32>
    %c2_85 = arith.constant 2 : index
    %c0_86 = arith.constant 0 : index
    %c0_87 = arith.constant 0 : index
    %86 = vector.load %arg3[%c2_85, %c0_86, %c0_87] : memref<3x128x48xf32, #tpu.memory_space<vmem>>, vector<1x128x48xf32>
    %87 = vector.shape_cast %86 : vector<1x128x48xf32> to vector<128x48xf32>
    %cst_88 = arith.constant dense<0.000000e+00> : vector<4x48xf32>
    %88 = tpu.matmul %85, %87, %cst_88 {dimension_numbers = #tpu.dot_dimension_numbers<[1], [0], [0], [1], [0, 0, 1, 1], [], []>} : vector<4x128xf32>, vector<128x48xf32>, vector<4x48xf32> -> vector<4x48xf32>
    %89 = arith.addf %84, %88 : vector<4x48xf32>
    %c0_89 = arith.constant 0 : index
    %c0_90 = arith.constant 0 : index
    %90 = vector.load %arg4[%c0_89, %c0_90] : memref<1x48xf32, #tpu.memory_space<vmem>>, vector<1x48xf32>
    %91 = vector.broadcast %90 : vector<1x48xf32> to vector<4x48xf32>
    %92 = arith.addf %89, %91 : vector<4x48xf32>
    %cst_91 = arith.constant 0.000000e+00 : f32
    %93 = vector.broadcast %cst_91 : f32 to vector<4x48xf32>
    %94 = arith.maximumf %92, %93 : vector<4x48xf32>
    %c0_92 = arith.constant 0 : index
    %c0_93 = arith.constant 0 : index
    %95 = vector.load %arg5[%c0_92, %c0_93] : memref<48x512xf32, #tpu.memory_space<vmem>>, vector<48x512xf32>
    %cst_94 = arith.constant dense<0.000000e+00> : vector<4x512xf32>
    %96 = tpu.matmul %94, %95, %cst_94 {dimension_numbers = #tpu.dot_dimension_numbers<[1], [0], [0], [1], [0, 0, 1, 1], [], []>} : vector<4x48xf32>, vector<48x512xf32>, vector<4x512xf32> -> vector<4x512xf32>
    %97 = vector.extract_strided_slice %96 {offsets = [0, 0], sizes = [1, 128], strides = [1, 1]} : vector<4x512xf32> to vector<1x128xf32>
    %98 = vector.extract_strided_slice %96 {offsets = [1, 128], sizes = [1, 128], strides = [1, 1]} : vector<4x512xf32> to vector<1x128xf32>
    %99 = arith.addf %97, %98 : vector<1x128xf32>
    %100 = vector.extract_strided_slice %96 {offsets = [2, 256], sizes = [1, 128], strides = [1, 1]} : vector<4x512xf32> to vector<1x128xf32>
    %101 = arith.addf %99, %100 : vector<1x128xf32>
    %102 = vector.extract_strided_slice %96 {offsets = [3, 384], sizes = [1, 128], strides = [1, 1]} : vector<4x512xf32> to vector<1x128xf32>
    %103 = arith.addf %101, %102 : vector<1x128xf32>
    %c0_95 = arith.constant 0 : index
    %c0_96 = arith.constant 0 : index
    %104 = vector.load %arg6[%c0_95, %c0_96] : memref<1x128xf32, #tpu.memory_space<vmem>>, vector<1x128xf32>
    %105 = arith.addf %103, %104 : vector<1x128xf32>
    %cst_97 = arith.constant 0.000000e+00 : f32
    %106 = vector.broadcast %cst_97 : f32 to vector<1x128xf32>
    %107 = arith.maximumf %105, %106 : vector<1x128xf32>
    %c0_98 = arith.constant 0 : index
    %c0_99 = arith.constant 0 : index
    %108 = vector.load %arg7[%c0_98, %c0_99] : memref<128x8xf32, #tpu.memory_space<vmem>>, vector<128x8xf32>
    %cst_100 = arith.constant dense<0.000000e+00> : vector<1x8xf32>
    %109 = tpu.matmul %107, %108, %cst_100 {dimension_numbers = #tpu.dot_dimension_numbers<[1], [0], [0], [1], [0, 0, 1, 1], [], []>} : vector<1x128xf32>, vector<128x8xf32>, vector<1x8xf32> -> vector<1x8xf32>
    %c0_101 = arith.constant 0 : index
    %c0_102 = arith.constant 0 : index
    %110 = vector.load %arg8[%c0_101, %c0_102] : memref<1x8xf32, #tpu.memory_space<vmem>>, vector<1x8xf32>
    %111 = arith.addf %109, %110 : vector<1x8xf32>
    %c0_103 = arith.constant 0 : index
    %c0_104 = arith.constant 0 : index
    %112 = vector.load %arg9[%c0_103, %c0_104] : memref<2x8xf32, #tpu.memory_space<vmem>>, vector<1x8xf32>
    tpu.vector_store %arg9[%c0_103, %c0_104], %111 {strides = array<i32>} : memref<2x8xf32, #tpu.memory_space<vmem>>, vector<1x8xf32>,
    %cst_105 = arith.constant 0.000000e+00 : f32
    %113 = vector.broadcast %cst_105 : f32 to vector<4x48xf32>
    %c9_106 = arith.constant 9 : index
    %c0_107 = arith.constant 0 : index
    %114 = tpu.strided_load %arg10[%c9_106, %c0_107] {strides = array<i32: 2, 1>} : memref<18x128xf32, #tpu.memory_space<vmem>>, vector<4x128xf32>
    %c0_108 = arith.constant 0 : index
    %c0_109 = arith.constant 0 : index
    %c0_110 = arith.constant 0 : index
    %115 = vector.load %arg3[%c0_108, %c0_109, %c0_110] : memref<3x128x48xf32, #tpu.memory_space<vmem>>, vector<1x128x48xf32>
    %116 = vector.shape_cast %115 : vector<1x128x48xf32> to vector<128x48xf32>
    %cst_111 = arith.constant dense<0.000000e+00> : vector<4x48xf32>
    %117 = tpu.matmul %114, %116, %cst_111 {dimension_numbers = #tpu.dot_dimension_numbers<[1], [0], [0], [1], [0, 0, 1, 1], [], []>} : vector<4x128xf32>, vector<128x48xf32>, vector<4x48xf32> -> vector<4x48xf32>
    %118 = arith.addf %113, %117 : vector<4x48xf32>
    %c10 = arith.constant 10 : index
    %c0_112 = arith.constant 0 : index
    %119 = tpu.strided_load %arg10[%c10, %c0_112] {strides = array<i32: 2, 1>} : memref<18x128xf32, #tpu.memory_space<vmem>>, vector<4x128xf32>
    %c1_113 = arith.constant 1 : index
    %c0_114 = arith.constant 0 : index
    %c0_115 = arith.constant 0 : index
    %120 = vector.load %arg3[%c1_113, %c0_114, %c0_115] : memref<3x128x48xf32, #tpu.memory_space<vmem>>, vector<1x128x48xf32>
    %121 = vector.shape_cast %120 : vector<1x128x48xf32> to vector<128x48xf32>
    %cst_116 = arith.constant dense<0.000000e+00> : vector<4x48xf32>
    %122 = tpu.matmul %119, %121, %cst_116 {dimension_numbers = #tpu.dot_dimension_numbers<[1], [0], [0], [1], [0, 0, 1, 1], [], []>} : vector<4x128xf32>, vector<128x48xf32>, vector<4x48xf32> -> vector<4x48xf32>
    %123 = arith.addf %118, %122 : vector<4x48xf32>
    %c11 = arith.constant 11 : index
    %c0_117 = arith.constant 0 : index
    %124 = tpu.strided_load %arg10[%c11, %c0_117] {strides = array<i32: 2, 1>} : memref<18x128xf32, #tpu.memory_space<vmem>>, vector<4x128xf32>
    %c2_118 = arith.constant 2 : index
    %c0_119 = arith.constant 0 : index
    %c0_120 = arith.constant 0 : index
    %125 = vector.load %arg3[%c2_118, %c0_119, %c0_120] : memref<3x128x48xf32, #tpu.memory_space<vmem>>, vector<1x128x48xf32>
    %126 = vector.shape_cast %125 : vector<1x128x48xf32> to vector<128x48xf32>
    %cst_121 = arith.constant dense<0.000000e+00> : vector<4x48xf32>
    %127 = tpu.matmul %124, %126, %cst_121 {dimension_numbers = #tpu.dot_dimension_numbers<[1], [0], [0], [1], [0, 0, 1, 1], [], []>} : vector<4x128xf32>, vector<128x48xf32>, vector<4x48xf32> -> vector<4x48xf32>
    %128 = arith.addf %123, %127 : vector<4x48xf32>
    %c0_122 = arith.constant 0 : index
    %c0_123 = arith.constant 0 : index
    %129 = vector.load %arg4[%c0_122, %c0_123] : memref<1x48xf32, #tpu.memory_space<vmem>>, vector<1x48xf32>
    %130 = vector.broadcast %129 : vector<1x48xf32> to vector<4x48xf32>
    %131 = arith.addf %128, %130 : vector<4x48xf32>
    %cst_124 = arith.constant 0.000000e+00 : f32
    %132 = vector.broadcast %cst_124 : f32 to vector<4x48xf32>
    %133 = arith.maximumf %131, %132 : vector<4x48xf32>
    %c0_125 = arith.constant 0 : index
    %c0_126 = arith.constant 0 : index
    %134 = vector.load %arg5[%c0_125, %c0_126] : memref<48x512xf32, #tpu.memory_space<vmem>>, vector<48x512xf32>
    %cst_127 = arith.constant dense<0.000000e+00> : vector<4x512xf32>
    %135 = tpu.matmul %133, %134, %cst_127 {dimension_numbers = #tpu.dot_dimension_numbers<[1], [0], [0], [1], [0, 0, 1, 1], [], []>} : vector<4x48xf32>, vector<48x512xf32>, vector<4x512xf32> -> vector<4x512xf32>
    %136 = vector.extract_strided_slice %135 {offsets = [0, 0], sizes = [1, 128], strides = [1, 1]} : vector<4x512xf32> to vector<1x128xf32>
    %137 = vector.extract_strided_slice %135 {offsets = [1, 128], sizes = [1, 128], strides = [1, 1]} : vector<4x512xf32> to vector<1x128xf32>
    %138 = arith.addf %136, %137 : vector<1x128xf32>
    %139 = vector.extract_strided_slice %135 {offsets = [2, 256], sizes = [1, 128], strides = [1, 1]} : vector<4x512xf32> to vector<1x128xf32>
    %140 = arith.addf %138, %139 : vector<1x128xf32>
    %141 = vector.extract_strided_slice %135 {offsets = [3, 384], sizes = [1, 128], strides = [1, 1]} : vector<4x512xf32> to vector<1x128xf32>
    %142 = arith.addf %140, %141 : vector<1x128xf32>
    %c0_128 = arith.constant 0 : index
    %c0_129 = arith.constant 0 : index
    %143 = vector.load %arg6[%c0_128, %c0_129] : memref<1x128xf32, #tpu.memory_space<vmem>>, vector<1x128xf32>
    %144 = arith.addf %142, %143 : vector<1x128xf32>
    %cst_130 = arith.constant 0.000000e+00 : f32
    %145 = vector.broadcast %cst_130 : f32 to vector<1x128xf32>
    %146 = arith.maximumf %144, %145 : vector<1x128xf32>
    %c0_131 = arith.constant 0 : index
    %c0_132 = arith.constant 0 : index
    %147 = vector.load %arg7[%c0_131, %c0_132] : memref<128x8xf32, #tpu.memory_space<vmem>>, vector<128x8xf32>
    %cst_133 = arith.constant dense<0.000000e+00> : vector<1x8xf32>
    %148 = tpu.matmul %146, %147, %cst_133 {dimension_numbers = #tpu.dot_dimension_numbers<[1], [0], [0], [1], [0, 0, 1, 1], [], []>} : vector<1x128xf32>, vector<128x8xf32>, vector<1x8xf32> -> vector<1x8xf32>
    %c0_134 = arith.constant 0 : index
    %c0_135 = arith.constant 0 : index
    %149 = vector.load %arg8[%c0_134, %c0_135] : memref<1x8xf32, #tpu.memory_space<vmem>>, vector<1x8xf32>
    %150 = arith.addf %148, %149 : vector<1x8xf32>
    %c1_136 = arith.constant 1 : index
    %c0_137 = arith.constant 0 : index
    %151 = vector.load %arg9[%c1_136, %c0_137] : memref<2x8xf32, #tpu.memory_space<vmem>>, vector<1x8xf32>
    tpu.vector_store %arg9[%c1_136, %c0_137], %150 {strides = array<i32>} : memref<2x8xf32, #tpu.memory_space<vmem>>, vector<1x8xf32>,
    return
  }
}

</mosaic_0001>

<llo_original>
// kernel: net_forward.1
$region0: #{net_forward.1}
  #allocation0 [shape = 'u32[]', space=smem, size = 0x4, offset = 0x4, fixed_abs, tag = 'smem constant byte address 0x4 - core index']
  #allocation1 [shape = 'u32[72,128]{1,0:T(1,128)}', space=vmem, size = 0x9000, scoped, tag = 'internal scratch']
  #allocation2 [shape = 'f32[18,128]{1,0:T(8,128)}', space=vmem, size = 0x3000, scoped, tag = 'scratch operand']
  %s0 = inlined_call_operand.vmem [shape: f32[60,45], index: 0, kind: input, shape index: {}]
  %s1 = inlined_call_operand.vmem [shape: f32[6,45,128], index: 1, kind: input, shape index: {}]
  %s2 = inlined_call_operand.vmem [shape: f32[1,128], index: 2, kind: input, shape index: {}]
  %s3 = inlined_call_operand.vmem [shape: f32[3,128,48], index: 3, kind: input, shape index: {}]
  %s4 = inlined_call_operand.vmem [shape: f32[1,48], index: 4, kind: input, shape index: {}]
  %s5 = inlined_call_operand.vmem [shape: f32[48,512], index: 5, kind: input, shape index: {}]
  %s6 = inlined_call_operand.vmem [shape: f32[1,128], index: 6, kind: input, shape index: {}]
  %s7 = inlined_call_operand.vmem [shape: f32[128,8], index: 7, kind: input, shape index: {}]
  %s8 = inlined_call_operand.vmem [shape: f32[1,8], index: 8, kind: input, shape index: {}]
  %s9 = inlined_call_operand.hbm [shape: f32[2,8], index: 9, kind: output, shape index: {}]
  %s10 = sld [smem:[#allocation0]]
  $region46: #{net_forward.1} parent=0
    _
  %s12 = ssub.s32 1, %s10
  %s13 = scalar_select 0, %s12, %s10
  $region1: #{net_forward.1} parent=0
    #allocation3 [shape = 'u8[1024]{0}', space=vmem, size = 0x400, scoped, tag = 'output window, operand 0, single buffered']
    #allocation4 [shape = 's32[1]{0}', space=sflag, size = 0x4, scoped, tag = 'scoped memory for net_forward.1']
    %14 = vsyncpa [#allocation4], 0
    // Predicated region
    $region2: #{net_forward.1} parent=1 // pred_check
      _
    $region3: #{net_forward.1} parent=1 // pred_check_branch
      %16 = sbr.rel (0) target = $region5
    $region4: #{net_forward.1} parent=1 // pred_region
      _
    $region5: #{net_forward.1} parent=1 // pred_fallthru
      _
    // Predicated region
    $region6: #{net_forward.1} parent=1 // pred_check
      _
    $region7: #{net_forward.1} parent=1 // pred_check_branch
      %18 = sbr.rel (0) target = $region9
    $region8: #{net_forward.1} parent=1 // pred_region
      _
    $region9: #{net_forward.1} parent=1 // pred_fallthru
      _
    // Predicated region
    $region10: #{net_forward.1} parent=1 // pred_check
      _
    $region11: #{net_forward.1} parent=1 // pred_check_branch
      %20 = sbr.rel (0) target = $region13
    $region12: #{net_forward.1} parent=1 // pred_region
      _
    $region13: #{net_forward.1} parent=1 // pred_fallthru
      _
    // Predicated region
    $region14: #{net_forward.1} parent=1 // pred_check
      _
    $region15: #{net_forward.1} parent=1 // pred_check_branch
      %22 = sbr.rel (0) target = $region17
    $region16: #{net_forward.1} parent=1 // pred_region
      _
    $region17: #{net_forward.1} parent=1 // pred_fallthru
      _
    // Predicated region
    $region18: #{net_forward.1} parent=1 // pred_check
      _
    $region19: #{net_forward.1} parent=1 // pred_check_branch
      %24 = sbr.rel (0) target = $region21
    $region20: #{net_forward.1} parent=1 // pred_region
      _
    $region21: #{net_forward.1} parent=1 // pred_fallthru
      _
    // Predicated region
    $region22: #{net_forward.1} parent=1 // pred_check
      _
    $region23: #{net_forward.1} parent=1 // pred_check_branch
      %26 = sbr.rel (0) target = $region25
    $region24: #{net_forward.1} parent=1 // pred_region
      _
    $region25: #{net_forward.1} parent=1 // pred_fallthru
      _
    // Predicated region
    $region26: #{net_forward.1} parent=1 // pred_check
      _
    $region27: #{net_forward.1} parent=1 // pred_check_branch
      %28 = sbr.rel (0) target = $region29
    $region28: #{net_forward.1} parent=1 // pred_region
      _
    $region29: #{net_forward.1} parent=1 // pred_fallthru
      _
    // Predicated region
    $region30: #{net_forward.1} parent=1 // pred_check
      _
    $region31: #{net_forward.1} parent=1 // pred_check_branch
      %30 = sbr.rel (0) target = $region33
    $region32: #{net_forward.1} parent=1 // pred_region
      _
    $region33: #{net_forward.1} parent=1 // pred_fallthru
      _
    // Predicated region
    $region34: #{net_forward.1} parent=1 // pred_check
      _
    $region35: #{net_forward.1} parent=1 // pred_check_branch
      %32 = sbr.rel (0) target = $region37
    $region36: #{net_forward.1} parent=1 // pred_region
      _
    $region37: #{net_forward.1} parent=1 // pred_fallthru
      _
    %v33 = vld [vmem:[%s0] ss:$3 sm:$0xff]
    %s34 = scalar_lea.vmem %s0, 24
    %v35 = vld [vmem:[%s34] ss:$3 sm:$0x1]
    %v36 = vld [vmem:[%s1] sm:$0xff]
    %v37 = vld [vmem:[%s1 + $0x8] sm:$0xff]
    %v38 = vld [vmem:[%s1 + $0x10] sm:$0xff]
    %v39 = vld [vmem:[%s1 + $0x18] sm:$0xff]
    %v40 = vld [vmem:[%s1 + $0x20] sm:$0xff]
    %v41 = vld [vmem:[%s1 + $0x28] sm:$0x1f]
    %s42 = scalar_lea.vmem %s0, 1
    %v43 = vld [vmem:[%s42] ss:$3 sm:$0xff]
    %s44 = scalar_lea.vmem %s0, 25
    %v45 = vld [vmem:[%s44] ss:$3 sm:$0x1]
    %s46 = scalar_lea.vmem %s1, 48
    %v47 = vld [vmem:[%s46] sm:$0xff]
    %v48 = vld [vmem:[%s46 + $0x8] sm:$0xff]
    %v49 = vld [vmem:[%s46 + $0x10] sm:$0xff]
    %v50 = vld [vmem:[%s46 + $0x18] sm:$0xff]
    %v51 = vld [vmem:[%s46 + $0x20] sm:$0xff]
    %v52 = vld [vmem:[%s46 + $0x28] sm:$0x1f]
    %vm53 = vcmask 367616
    %v55 = vsel %vm53, %v43, 0
    %v58 = vsel %vm53, %v45, 0
    %vm60 = vcmask 1044480
    %v62 = vsel %vm60, %v52, 0
    %64 = vmatpush.msra.mxu0 0.0
    %65 = vmatpush.msra.mxu0 0.0
    %66 = vmatpush.msra.mxu0 0.0
    %67 = vmatpush.msra.mxu0 0.0
    %68 = vmatpush.msra.mxu0 0.0
    %69 = vmatpush.msra.mxu0 0.0
    %70 = vmatpush.msra.mxu0 0.0
    %71 = vmatpush.msra.mxu0 0.0
    %72 = vmatpush.msra.mxu0 0.0
    %73 = vmatpush.msra.mxu0 0.0
    %74 = vmatpush.msra.mxu0 %v62
    %75 = vmatpush.msra.mxu0 %v51
    %76 = vmatpush.msra.mxu0 %v50
    %77 = vmatpush.msra.mxu0 %v49
    %78 = vmatpush.msra.mxu0 %v48
    %79 = vmatpush.msra.mxu0 %v47
    %80 = vmatmul.f32.gmra.mxu0 %v55
    %v81 = vpop.f32.mrf.mxu0
    %v82 = vadd.f32 0.0, %v81
    %83 = vmatmul.f32.gmra.mxu0 %v58
    %v84 = vpop.f32.mrf.mxu0
    %v85 = vadd.f32 0.0, %v84
    %86 = vdwg.mxu0
    %v88 = vsel %vm53, %v33, 0
    %v91 = vsel %vm53, %v35, 0
    %v94 = vsel %vm60, %v41, 0
    %96 = vmatpush.msra.mxu0 0.0
    %97 = vmatpush.msra.mxu0 0.0
    %98 = vmatpush.msra.mxu0 0.0
    %99 = vmatpush.msra.mxu0 0.0
    %100 = vmatpush.msra.mxu0 0.0
    %101 = vmatpush.msra.mxu0 0.0
    %102 = vmatpush.msra.mxu0 0.0
    %103 = vmatpush.msra.mxu0 0.0
    %104 = vmatpush.msra.mxu0 0.0
    %105 = vmatpush.msra.mxu0 0.0
    %106 = vmatpush.msra.mxu0 %v94
    %107 = vmatpush.msra.mxu0 %v40
    %108 = vmatpush.msra.mxu0 %v39
    %109 = vmatpush.msra.mxu0 %v38
    %110 = vmatpush.msra.mxu0 %v37
    %111 = vmatpush.msra.mxu0 %v36
    %112 = vmatmul.f32.gmra.mxu0 %v88
    %v113 = vpop.f32.mrf.mxu0
    %v114 = vadd.f32 %v82, %v113
    %115 = vmatmul.f32.gmra.mxu0 %v91
    %v116 = vpop.f32.mrf.mxu0
    %v117 = vadd.f32 %v85, %v116
    %118 = vdwg.mxu0
    %s119 = scalar_lea.vmem %s0, 2
    %v120 = vld [vmem:[%s119] ss:$3 sm:$0xff]
    %s121 = scalar_lea.vmem %s0, 26
    %v122 = vld [vmem:[%s121] ss:$3 sm:$0x1]
    %s123 = scalar_lea.vmem %s1, 96
    %v124 = vld [vmem:[%s123] sm:$0xff]
    %v125 = vld [vmem:[%s123 + $0x8] sm:$0xff]
    %v126 = vld [vmem:[%s123 + $0x10] sm:$0xff]
    %v127 = vld [vmem:[%s123 + $0x18] sm:$0xff]
    %v128 = vld [vmem:[%s123 + $0x20] sm:$0xff]
    %v129 = vld [vmem:[%s123 + $0x28] sm:$0x1f]
    %v131 = vsel %vm53, %v120, 0
    %v134 = vsel %vm53, %v122, 0
    %v137 = vsel %vm60, %v129, 0
    %139 = vmatpush.msra.mxu0 0.0
    %140 = vmatpush.msra.mxu0 0.0
    %141 = vmatpush.msra.mxu0 0.0
    %142 = vmatpush.msra.mxu0 0.0
    %143 = vmatpush.msra.mxu0 0.0
    %144 = vmatpush.msra.mxu0 0.0
    %145 = vmatpush.msra.mxu0 0.0
    %146 = vmatpush.msra.mxu0 0.0
    %147 = vmatpush.msra.mxu0 0.0
    %148 = vmatpush.msra.mxu0 0.0
    %149 = vmatpush.msra.mxu0 %v137
    %150 = vmatpush.msra.mxu0 %v128
    %151 = vmatpush.msra.mxu0 %v127
    %152 = vmatpush.msra.mxu0 %v126
    %153 = vmatpush.msra.mxu0 %v125
    %154 = vmatpush.msra.mxu0 %v124
    %155 = vmatmul.f32.gmra.mxu0 %v131
    %v156 = vpop.f32.mrf.mxu0
    %v157 = vadd.f32 0.0, %v156
    %158 = vmatmul.f32.gmra.mxu0 %v134
    %v159 = vpop.f32.mrf.mxu0
    %v160 = vadd.f32 0.0, %v159
    %161 = vdwg.mxu0
    %v162 = vadd.f32 %v114, %v157
    %v163 = vadd.f32 %v117, %v160
    %s164 = scalar_lea.vmem %s0, 3
    %v165 = vld [vmem:[%s164] ss:$3 sm:$0xff]
    %s166 = scalar_lea.vmem %s0, 27
    %v167 = vld [vmem:[%s166] ss:$3 sm:$0x1]
    %s168 = scalar_lea.vmem %s1, 144
    %v169 = vld [vmem:[%s168] sm:$0xff]
    %v170 = vld [vmem:[%s168 + $0x8] sm:$0xff]
    %v171 = vld [vmem:[%s168 + $0x10] sm:$0xff]
    %v172 = vld [vmem:[%s168 + $0x18] sm:$0xff]
    %v173 = vld [vmem:[%s168 + $0x20] sm:$0xff]
    %v174 = vld [vmem:[%s168 + $0x28] sm:$0x1f]
    %v176 = vsel %vm53, %v165, 0
    %v179 = vsel %vm53, %v167, 0
    %v182 = vsel %vm60, %v174, 0
    %184 = vmatpush.msra.mxu0 0.0
    %185 = vmatpush.msra.mxu0 0.0
    %186 = vmatpush.msra.mxu0 0.0
    %187 = vmatpush.msra.mxu0 0.0
    %188 = vmatpush.msra.mxu0 0.0
    %189 = vmatpush.msra.mxu0 0.0
    %190 = vmatpush.msra.mxu0 0.0
    %191 = vmatpush.msra.mxu0 0.0
    %192 = vmatpush.msra.mxu0 0.0
    %193 = vmatpush.msra.mxu0 0.0
    %194 = vmatpush.msra.mxu0 %v182
    %195 = vmatpush.msra.mxu0 %v173
    %196 = vmatpush.msra.mxu0 %v172
    %197 = vmatpush.msra.mxu0 %v171
    %198 = vmatpush.msra.mxu0 %v170
    %199 = vmatpush.msra.mxu0 %v169
    %200 = vmatmul.f32.gmra.mxu0 %v176
    %v201 = vpop.f32.mrf.mxu0
    %v202 = vadd.f32 0.0, %v201
    %203 = vmatmul.f32.gmra.mxu0 %v179
    %v204 = vpop.f32.mrf.mxu0
    %v205 = vadd.f32 0.0, %v204
    %206 = vdwg.mxu0
    %v207 = vadd.f32 %v162, %v202
    %v208 = vadd.f32 %v163, %v205
    %s209 = scalar_lea.vmem %s0, 4
    %v210 = vld [vmem:[%s209] ss:$3 sm:$0xff]
    %s211 = scalar_lea.vmem %s0, 28
    %v212 = vld [vmem:[%s211] ss:$3 sm:$0x1]
    %s213 = scalar_lea.vmem %s1, 192
    %v214 = vld [vmem:[%s213] sm:$0xff]
    %v215 = vld [vmem:[%s213 + $0x8] sm:$0xff]
    %v216 = vld [vmem:[%s213 + $0x10] sm:$0xff]
    %v217 = vld [vmem:[%s213 + $0x18] sm:$0xff]
    %v218 = vld [vmem:[%s213 + $0x20] sm:$0xff]
    %v219 = vld [vmem:[%s213 + $0x28] sm:$0x1f]
    %v221 = vsel %vm53, %v210, 0
    %v224 = vsel %vm53, %v212, 0
    %v227 = vsel %vm60, %v219, 0
    %229 = vmatpush.msra.mxu0 0.0
    %230 = vmatpush.msra.mxu0 0.0
    %231 = vmatpush.msra.mxu0 0.0
    %232 = vmatpush.msra.mxu0 0.0
    %233 = vmatpush.msra.mxu0 0.0
    %234 = vmatpush.msra.mxu0 0.0
    %235 = vmatpush.msra.mxu0 0.0
    %236 = vmatpush.msra.mxu0 0.0
    %237 = vmatpush.msra.mxu0 0.0
    %238 = vmatpush.msra.mxu0 0.0
    %239 = vmatpush.msra.mxu0 %v227
    %240 = vmatpush.msra.mxu0 %v218
    %241 = vmatpush.msra.mxu0 %v217
    %242 = vmatpush.msra.mxu0 %v216
    %243 = vmatpush.msra.mxu0 %v215
    %244 = vmatpush.msra.mxu0 %v214
    %245 = vmatmul.f32.gmra.mxu0 %v221
    %v246 = vpop.f32.mrf.mxu0
    %v247 = vadd.f32 0.0, %v246
    %248 = vmatmul.f32.gmra.mxu0 %v224
    %v249 = vpop.f32.mrf.mxu0
    %v250 = vadd.f32 0.0, %v249
    %251 = vdwg.mxu0
    %v252 = vadd.f32 %v207, %v247
    %v253 = vadd.f32 %v208, %v250
    %s254 = scalar_lea.vmem %s0, 5
    %v255 = vld [vmem:[%s254] ss:$3 sm:$0xff]
    %s256 = scalar_lea.vmem %s0, 29
    %v257 = vld [vmem:[%s256] ss:$3 sm:$0x1]
    %s258 = scalar_lea.vmem %s1, 240
    %v259 = vld [vmem:[%s258] sm:$0xff]
    %v260 = vld [vmem:[%s258 + $0x8] sm:$0xff]
    %v261 = vld [vmem:[%s258 + $0x10] sm:$0xff]
    %v262 = vld [vmem:[%s258 + $0x18] sm:$0xff]
    %v263 = vld [vmem:[%s258 + $0x20] sm:$0xff]
    %v264 = vld [vmem:[%s258 + $0x28] sm:$0x1f]
    %v266 = vsel %vm53, %v255, 0
    %v269 = vsel %vm53, %v257, 0
    %v272 = vsel %vm60, %v264, 0
    %274 = vmatpush.msra.mxu0 0.0
    %275 = vmatpush.msra.mxu0 0.0
    %276 = vmatpush.msra.mxu0 0.0
    %277 = vmatpush.msra.mxu0 0.0
    %278 = vmatpush.msra.mxu0 0.0
    %279 = vmatpush.msra.mxu0 0.0
    %280 = vmatpush.msra.mxu0 0.0
    %281 = vmatpush.msra.mxu0 0.0
    %282 = vmatpush.msra.mxu0 0.0
    %283 = vmatpush.msra.mxu0 0.0
    %284 = vmatpush.msra.mxu0 %v272
    %285 = vmatpush.msra.mxu0 %v263
    %286 = vmatpush.msra.mxu0 %v262
    %287 = vmatpush.msra.mxu0 %v261
    %288 = vmatpush.msra.mxu0 %v260
    %289 = vmatpush.msra.mxu0 %v259
    %290 = vmatmul.f32.gmra.mxu0 %v266
    %v291 = vpop.f32.mrf.mxu0
    %v292 = vadd.f32 0.0, %v291
    %293 = vmatmul.f32.gmra.mxu0 %v269
    %v294 = vpop.f32.mrf.mxu0
    %v295 = vadd.f32 0.0, %v294
    %296 = vdwg.mxu0
    %v297 = vadd.f32 %v252, %v292
    %v298 = vadd.f32 %v253, %v295
    %v299 = vld [vmem:[%s2] sm:$0x1]
    %v301 = vperm.slane %v299, 0
    %v303 = vadd.f32 %v297, %v301
    %v304 = vadd.f32 %v298, %v301
    %v305 = vmax.f32 %v303, 0.0
    %v306 = vmax.f32 %v304, 0.0
    %307 = vst [vmem:[#allocation2] sm:$0xff] %v305
    %308 = vst [vmem:[#allocation2 + $0x8] sm:$0x1] %v306
    %s309 = scalar_lea.vmem %s0, 30
    %v310 = vld [vmem:[%s309] ss:$3 sm:$0xff]
    %s311 = scalar_lea.vmem %s0, 54
    %v312 = vld [vmem:[%s311] ss:$3 sm:$0x1]
    %v313 = vld [vmem:[%s1] sm:$0xff]
    %v314 = vld [vmem:[%s1 + $0x8] sm:$0xff]
    %v315 = vld [vmem:[%s1 + $0x10] sm:$0xff]
    %v316 = vld [vmem:[%s1 + $0x18] sm:$0xff]
    %v317 = vld [vmem:[%s1 + $0x20] sm:$0xff]
    %v318 = vld [vmem:[%s1 + $0x28] sm:$0x1f]
    %s319 = scalar_lea.vmem %s0, 31
    %v320 = vld [vmem:[%s319] ss:$3 sm:$0xff]
    %s321 = scalar_lea.vmem %s0, 55
    %v322 = vld [vmem:[%s321] ss:$3 sm:$0x1]
    %v323 = vld [vmem:[%s46] sm:$0xff]
    %v324 = vld [vmem:[%s46 + $0x8] sm:$0xff]
    %v325 = vld [vmem:[%s46 + $0x10] sm:$0xff]
    %v326 = vld [vmem:[%s46 + $0x18] sm:$0xff]
    %v327 = vld [vmem:[%s46 + $0x20] sm:$0xff]
    %v328 = vld [vmem:[%s46 + $0x28] sm:$0x1f]
    %v330 = vsel %vm53, %v320, 0
    %v333 = vsel %vm53, %v322, 0
    %v336 = vsel %vm60, %v328, 0
    %338 = vmatpush.msra.mxu0 0.0
    %339 = vmatpush.msra.mxu0 0.0
    %340 = vmatpush.msra.mxu0 0.0
    %341 = vmatpush.msra.mxu0 0.0
    %342 = vmatpush.msra.mxu0 0.0
    %343 = vmatpush.msra.mxu0 0.0
    %344 = vmatpush.msra.mxu0 0.0
    %345 = vmatpush.msra.mxu0 0.0
    %346 = vmatpush.msra.mxu0 0.0
    %347 = vmatpush.msra.mxu0 0.0
    %348 = vmatpush.msra.mxu0 %v336
    %349 = vmatpush.msra.mxu0 %v327
    %350 = vmatpush.msra.mxu0 %v326
    %351 = vmatpush.msra.mxu0 %v325
    %352 = vmatpush.msra.mxu0 %v324
    %353 = vmatpush.msra.mxu0 %v323
    %354 = vmatmul.f32.gmra.mxu0 %v330
    %v355 = vpop.f32.mrf.mxu0
    %v356 = vadd.f32 0.0, %v355
    %357 = vmatmul.f32.gmra.mxu0 %v333
    %v358 = vpop.f32.mrf.mxu0
    %v359 = vadd.f32 0.0, %v358
    %360 = vdwg.mxu0
    %v362 = vsel %vm53, %v310, 0
    %v365 = vsel %vm53, %v312, 0
    %v368 = vsel %vm60, %v318, 0
    %370 = vmatpush.msra.mxu0 0.0
    %371 = vmatpush.msra.mxu0 0.0
    %372 = vmatpush.msra.mxu0 0.0
    %373 = vmatpush.msra.mxu0 0.0
    %374 = vmatpush.msra.mxu0 0.0
    %375 = vmatpush.msra.mxu0 0.0
    %376 = vmatpush.msra.mxu0 0.0
    %377 = vmatpush.msra.mxu0 0.0
    %378 = vmatpush.msra.mxu0 0.0
    %379 = vmatpush.msra.mxu0 0.0
    %380 = vmatpush.msra.mxu0 %v368
    %381 = vmatpush.msra.mxu0 %v317
    %382 = vmatpush.msra.mxu0 %v316
    %383 = vmatpush.msra.mxu0 %v315
    %384 = vmatpush.msra.mxu0 %v314
    %385 = vmatpush.msra.mxu0 %v313
    %386 = vmatmul.f32.gmra.mxu0 %v362
    %v387 = vpop.f32.mrf.mxu0
    %v388 = vadd.f32 %v356, %v387
    %389 = vmatmul.f32.gmra.mxu0 %v365
    %v390 = vpop.f32.mrf.mxu0
    %v391 = vadd.f32 %v359, %v390
    %392 = vdwg.mxu0
    %s393 = scalar_lea.vmem %s0, 32
    %v394 = vld [vmem:[%s393] ss:$3 sm:$0xff]
    %s395 = scalar_lea.vmem %s0, 56
    %v396 = vld [vmem:[%s395] ss:$3 sm:$0x1]
    %v397 = vld [vmem:[%s123] sm:$0xff]
    %v398 = vld [vmem:[%s123 + $0x8] sm:$0xff]
    %v399 = vld [vmem:[%s123 + $0x10] sm:$0xff]
    %v400 = vld [vmem:[%s123 + $0x18] sm:$0xff]
    %v401 = vld [vmem:[%s123 + $0x20] sm:$0xff]
    %v402 = vld [vmem:[%s123 + $0x28] sm:$0x1f]
    %v404 = vsel %vm53, %v394, 0
    %v407 = vsel %vm53, %v396, 0
    %v410 = vsel %vm60, %v402, 0
    %412 = vmatpush.msra.mxu0 0.0
    %413 = vmatpush.msra.mxu0 0.0
    %414 = vmatpush.msra.mxu0 0.0
    %415 = vmatpush.msra.mxu0 0.0
    %416 = vmatpush.msra.mxu0 0.0
    %417 = vmatpush.msra.mxu0 0.0
    %418 = vmatpush.msra.mxu0 0.0
    %419 = vmatpush.msra.mxu0 0.0
    %420 = vmatpush.msra.mxu0 0.0
    %421 = vmatpush.msra.mxu0 0.0
    %422 = vmatpush.msra.mxu0 %v410
    %423 = vmatpush.msra.mxu0 %v401
    %424 = vmatpush.msra.mxu0 %v400
    %425 = vmatpush.msra.mxu0 %v399
    %426 = vmatpush.msra.mxu0 %v398
    %427 = vmatpush.msra.mxu0 %v397
    %428 = vmatmul.f32.gmra.mxu0 %v404
    %v429 = vpop.f32.mrf.mxu0
    %v430 = vadd.f32 0.0, %v429
    %431 = vmatmul.f32.gmra.mxu0 %v407
    %v432 = vpop.f32.mrf.mxu0
    %v433 = vadd.f32 0.0, %v432
    %434 = vdwg.mxu0
    %v435 = vadd.f32 %v388, %v430
    %v436 = vadd.f32 %v391, %v433
    %s437 = scalar_lea.vmem %s0, 33
    %v438 = vld [vmem:[%s437] ss:$3 sm:$0xff]
    %s439 = scalar_lea.vmem %s0, 57
    %v440 = vld [vmem:[%s439] ss:$3 sm:$0x1]
    %v441 = vld [vmem:[%s168] sm:$0xff]
    %v442 = vld [vmem:[%s168 + $0x8] sm:$0xff]
    %v443 = vld [vmem:[%s168 + $0x10] sm:$0xff]
    %v444 = vld [vmem:[%s168 + $0x18] sm:$0xff]
    %v445 = vld [vmem:[%s168 + $0x20] sm:$0xff]
    %v446 = vld [vmem:[%s168 + $0x28] sm:$0x1f]
    %v448 = vsel %vm53, %v438, 0
    %v451 = vsel %vm53, %v440, 0
    %v454 = vsel %vm60, %v446, 0
    %456 = vmatpush.msra.mxu0 0.0
    %457 = vmatpush.msra.mxu0 0.0
    %458 = vmatpush.msra.mxu0 0.0
    %459 = vmatpush.msra.mxu0 0.0
    %460 = vmatpush.msra.mxu0 0.0
    %461 = vmatpush.msra.mxu0 0.0
    %462 = vmatpush.msra.mxu0 0.0
    %463 = vmatpush.msra.mxu0 0.0
    %464 = vmatpush.msra.mxu0 0.0
    %465 = vmatpush.msra.mxu0 0.0
    %466 = vmatpush.msra.mxu0 %v454
    %467 = vmatpush.msra.mxu0 %v445
    %468 = vmatpush.msra.mxu0 %v444
    %469 = vmatpush.msra.mxu0 %v443
    %470 = vmatpush.msra.mxu0 %v442
    %471 = vmatpush.msra.mxu0 %v441
    %472 = vmatmul.f32.gmra.mxu0 %v448
    %v473 = vpop.f32.mrf.mxu0
    %v474 = vadd.f32 0.0, %v473
    %475 = vmatmul.f32.gmra.mxu0 %v451
    %v476 = vpop.f32.mrf.mxu0
    %v477 = vadd.f32 0.0, %v476
    %478 = vdwg.mxu0
    %v479 = vadd.f32 %v435, %v474
    %v480 = vadd.f32 %v436, %v477
    %s481 = scalar_lea.vmem %s0, 34
    %v482 = vld [vmem:[%s481] ss:$3 sm:$0xff]
    %s483 = scalar_lea.vmem %s0, 58
    %v484 = vld [vmem:[%s483] ss:$3 sm:$0x1]
    %v485 = vld [vmem:[%s213] sm:$0xff]
    %v486 = vld [vmem:[%s213 + $0x8] sm:$0xff]
    %v487 = vld [vmem:[%s213 + $0x10] sm:$0xff]
    %v488 = vld [vmem:[%s213 + $0x18] sm:$0xff]
    %v489 = vld [vmem:[%s213 + $0x20] sm:$0xff]
    %v490 = vld [vmem:[%s213 + $0x28] sm:$0x1f]
    %v492 = vsel %vm53, %v482, 0
    %v495 = vsel %vm53, %v484, 0
    %v498 = vsel %vm60, %v490, 0
    %500 = vmatpush.msra.mxu0 0.0
    %501 = vmatpush.msra.mxu0 0.0
    %502 = vmatpush.msra.mxu0 0.0
    %503 = vmatpush.msra.mxu0 0.0
    %504 = vmatpush.msra.mxu0 0.0
    %505 = vmatpush.msra.mxu0 0.0
    %506 = vmatpush.msra.mxu0 0.0
    %507 = vmatpush.msra.mxu0 0.0
    %508 = vmatpush.msra.mxu0 0.0
    %509 = vmatpush.msra.mxu0 0.0
    %510 = vmatpush.msra.mxu0 %v498
    %511 = vmatpush.msra.mxu0 %v489
    %512 = vmatpush.msra.mxu0 %v488
    %513 = vmatpush.msra.mxu0 %v487
    %514 = vmatpush.msra.mxu0 %v486
    %515 = vmatpush.msra.mxu0 %v485
    %516 = vmatmul.f32.gmra.mxu0 %v492
    %v517 = vpop.f32.mrf.mxu0
    %v518 = vadd.f32 0.0, %v517
    %519 = vmatmul.f32.gmra.mxu0 %v495
    %v520 = vpop.f32.mrf.mxu0
    %v521 = vadd.f32 0.0, %v520
    %522 = vdwg.mxu0
    %v523 = vadd.f32 %v479, %v518
    %v524 = vadd.f32 %v480, %v521
    %s525 = scalar_lea.vmem %s0, 35
    %v526 = vld [vmem:[%s525] ss:$3 sm:$0xff]
    %s527 = scalar_lea.vmem %s0, 59
    %v528 = vld [vmem:[%s527] ss:$3 sm:$0x1]
    %v529 = vld [vmem:[%s258] sm:$0xff]
    %v530 = vld [vmem:[%s258 + $0x8] sm:$0xff]
    %v531 = vld [vmem:[%s258 + $0x10] sm:$0xff]
    %v532 = vld [vmem:[%s258 + $0x18] sm:$0xff]
    %v533 = vld [vmem:[%s258 + $0x20] sm:$0xff]
    %v534 = vld [vmem:[%s258 + $0x28] sm:$0x1f]
    %v536 = vsel %vm53, %v526, 0
    %v539 = vsel %vm53, %v528, 0
    %v542 = vsel %vm60, %v534, 0
    %544 = vmatpush.msra.mxu0 0.0
    %545 = vmatpush.msra.mxu0 0.0
    %546 = vmatpush.msra.mxu0 0.0
    %547 = vmatpush.msra.mxu0 0.0
    %548 = vmatpush.msra.mxu0 0.0
    %549 = vmatpush.msra.mxu0 0.0
    %550 = vmatpush.msra.mxu0 0.0
    %551 = vmatpush.msra.mxu0 0.0
    %552 = vmatpush.msra.mxu0 0.0
    %553 = vmatpush.msra.mxu0 0.0
    %554 = vmatpush.msra.mxu0 %v542
    %555 = vmatpush.msra.mxu0 %v533
    %556 = vmatpush.msra.mxu0 %v532
    %557 = vmatpush.msra.mxu0 %v531
    %558 = vmatpush.msra.mxu0 %v530
    %559 = vmatpush.msra.mxu0 %v529
    %560 = vmatmul.f32.gmra.mxu0 %v536
    %v561 = vpop.f32.mrf.mxu0
    %v562 = vadd.f32 0.0, %v561
    %563 = vmatmul.f32.gmra.mxu0 %v539
    %v564 = vpop.f32.mrf.mxu0
    %v565 = vadd.f32 0.0, %v564
    %566 = vdwg.mxu0
    %v567 = vadd.f32 %v523, %v562
    %v568 = vadd.f32 %v524, %v565
    %v569 = vld [vmem:[%s2] sm:$0x1]
    %v571 = vperm.slane %v569, 0
    %v573 = vadd.f32 %v567, %v571
    %v574 = vadd.f32 %v568, %v571
    %v575 = vmax.f32 %v573, 0.0
    %v576 = vmax.f32 %v574, 0.0
    %577 = vst [vmem:[#allocation2 + $0x9] sm:$0xff] %v575
    %578 = vst [vmem:[#allocation2 + $0x11] sm:$0x1] %v576
    %v579 = vld [vmem:[#allocation2] ss:$2 sm:$0xf]
    %v580 = vld [vmem:[%s3] sm:$0xff]
    %v581 = vld [vmem:[%s3 + $0x8] sm:$0xff]
    %v582 = vld [vmem:[%s3 + $0x10] sm:$0xff]
    %v583 = vld [vmem:[%s3 + $0x18] sm:$0xff]
    %v584 = vld [vmem:[%s3 + $0x20] sm:$0xff]
    %v585 = vld [vmem:[%s3 + $0x28] sm:$0xff]
    %v586 = vld [vmem:[%s3 + $0x30] sm:$0xff]
    %v587 = vld [vmem:[%s3 + $0x38] sm:$0xff]
    %v588 = vld [vmem:[%s3 + $0x40] sm:$0xff]
    %v589 = vld [vmem:[%s3 + $0x48] sm:$0xff]
    %v590 = vld [vmem:[%s3 + $0x50] sm:$0xff]
    %v591 = vld [vmem:[%s3 + $0x58] sm:$0xff]
    %v592 = vld [vmem:[%s3 + $0x60] sm:$0xff]
    %v593 = vld [vmem:[%s3 + $0x68] sm:$0xff]
    %v594 = vld [vmem:[%s3 + $0x70] sm:$0xff]
    %v595 = vld [vmem:[%s3 + $0x78] sm:$0xff]
    %s596 = scalar_lea.vmem [#allocation2], 1
    %v597 = vld [vmem:[%s596] ss:$2 sm:$0xf]
    %s598 = scalar_lea.vmem %s3, 128
    %v599 = vld [vmem:[%s598] sm:$0xff]
    %v600 = vld [vmem:[%s598 + $0x8] sm:$0xff]
    %v601 = vld [vmem:[%s598 + $0x10] sm:$0xff]
    %v602 = vld [vmem:[%s598 + $0x18] sm:$0xff]
    %v603 = vld [vmem:[%s598 + $0x20] sm:$0xff]
    %v604 = vld [vmem:[%s598 + $0x28] sm:$0xff]
    %v605 = vld [vmem:[%s598 + $0x30] sm:$0xff]
    %v606 = vld [vmem:[%s598 + $0x38] sm:$0xff]
    %v607 = vld [vmem:[%s598 + $0x40] sm:$0xff]
    %v608 = vld [vmem:[%s598 + $0x48] sm:$0xff]
    %v609 = vld [vmem:[%s598 + $0x50] sm:$0xff]
    %v610 = vld [vmem:[%s598 + $0x58] sm:$0xff]
    %v611 = vld [vmem:[%s598 + $0x60] sm:$0xff]
    %v612 = vld [vmem:[%s598 + $0x68] sm:$0xff]
    %v613 = vld [vmem:[%s598 + $0x70] sm:$0xff]
    %v614 = vld [vmem:[%s598 + $0x78] sm:$0xff]
    %615 = vmatpush.msra.mxu0 %v614
    %616 = vmatpush.msra.mxu0 %v613
    %617 = vmatpush.msra.mxu0 %v612
    %618 = vmatpush.msra.mxu0 %v611
    %619 = vmatpush.msra.mxu0 %v610
    %620 = vmatpush.msra.mxu0 %v609
    %621 = vmatpush.msra.mxu0 %v608
    %622 = vmatpush.msra.mxu0 %v607
    %623 = vmatpush.msra.mxu0 %v606
    %624 = vmatpush.msra.mxu0 %v605
    %625 = vmatpush.msra.mxu0 %v604
    %626 = vmatpush.msra.mxu0 %v603
    %627 = vmatpush.msra.mxu0 %v602
    %628 = vmatpush.msra.mxu0 %v601
    %629 = vmatpush.msra.mxu0 %v600
    %630 = vmatpush.msra.mxu0 %v599
    %631 = vmatmul.f32.gmra.mxu0 %v597
    %v632 = vpop.f32.mrf.mxu0
    %v633 = vadd.f32 0.0, %v632
    %634 = vdwg.mxu0
    %635 = vmatpush.msra.mxu0 %v595
    %636 = vmatpush.msra.mxu0 %v594
    %637 = vmatpush.msra.mxu0 %v593
    %638 = vmatpush.msra.mxu0 %v592
    %639 = vmatpush.msra.mxu0 %v591
    %640 = vmatpush.msra.mxu0 %v590
    %641 = vmatpush.msra.mxu0 %v589
    %642 = vmatpush.msra.mxu0 %v588
    %643 = vmatpush.msra.mxu0 %v587
    %644 = vmatpush.msra.mxu0 %v586
    %645 = vmatpush.msra.mxu0 %v585
    %646 = vmatpush.msra.mxu0 %v584
    %647 = vmatpush.msra.mxu0 %v583
    %648 = vmatpush.msra.mxu0 %v582
    %649 = vmatpush.msra.mxu0 %v581
    %650 = vmatpush.msra.mxu0 %v580
    %651 = vmatmul.f32.gmra.mxu0 %v579
    %v652 = vpop.f32.mrf.mxu0
    %v653 = vadd.f32 %v633, %v652
    %654 = vdwg.mxu0
    %s655 = scalar_lea.vmem [#allocation2], 2
    %v656 = vld [vmem:[%s655] ss:$2 sm:$0xf]
    %s657 = scalar_lea.vmem %s3, 256
    %v658 = vld [vmem:[%s657] sm:$0xff]
    %v659 = vld [vmem:[%s657 + $0x8] sm:$0xff]
    %v660 = vld [vmem:[%s657 + $0x10] sm:$0xff]
    %v661 = vld [vmem:[%s657 + $0x18] sm:$0xff]
    %v662 = vld [vmem:[%s657 + $0x20] sm:$0xff]
    %v663 = vld [vmem:[%s657 + $0x28] sm:$0xff]
    %v664 = vld [vmem:[%s657 + $0x30] sm:$0xff]
    %v665 = vld [vmem:[%s657 + $0x38] sm:$0xff]
    %v666 = vld [vmem:[%s657 + $0x40] sm:$0xff]
    %v667 = vld [vmem:[%s657 + $0x48] sm:$0xff]
    %v668 = vld [vmem:[%s657 + $0x50] sm:$0xff]
    %v669 = vld [vmem:[%s657 + $0x58] sm:$0xff]
    %v670 = vld [vmem:[%s657 + $0x60] sm:$0xff]
    %v671 = vld [vmem:[%s657 + $0x68] sm:$0xff]
    %v672 = vld [vmem:[%s657 + $0x70] sm:$0xff]
    %v673 = vld [vmem:[%s657 + $0x78] sm:$0xff]
    %674 = vmatpush.msra.mxu0 %v673
    %675 = vmatpush.msra.mxu0 %v672
    %676 = vmatpush.msra.mxu0 %v671
    %677 = vmatpush.msra.mxu0 %v670
    %678 = vmatpush.msra.mxu0 %v669
    %679 = vmatpush.msra.mxu0 %v668
    %680 = vmatpush.msra.mxu0 %v667
    %681 = vmatpush.msra.mxu0 %v666
    %682 = vmatpush.msra.mxu0 %v665
    %683 = vmatpush.msra.mxu0 %v664
    %684 = vmatpush.msra.mxu0 %v663
    %685 = vmatpush.msra.mxu0 %v662
    %686 = vmatpush.msra.mxu0 %v661
    %687 = vmatpush.msra.mxu0 %v660
    %688 = vmatpush.msra.mxu0 %v659
    %689 = vmatpush.msra.mxu0 %v658
    %690 = vmatmul.f32.gmra.mxu0 %v656
    %v691 = vpop.f32.mrf.mxu0
    %v692 = vadd.f32 0.0, %v691
    %693 = vdwg.mxu0
    %v694 = vadd.f32 %v653, %v692
    %v695 = vld [vmem:[%s4] sm:$0x1]
    %v697 = vperm.slane %v695, 0
    %v699 = vadd.f32 %v694, %v697
    %v700 = vmax.f32 %v699, 0.0
    %v701 = vld [vmem:[%s5] sm:$0xff]
    %v702 = vld [vmem:[%s5 + $0x8] sm:$0xff]
    %v703 = vld [vmem:[%s5 + $0x10] sm:$0xff]
    %v704 = vld [vmem:[%s5 + $0x18] sm:$0xff]
    %v705 = vld [vmem:[%s5 + $0x20] sm:$0xff]
    %v706 = vld [vmem:[%s5 + $0x28] sm:$0xff]
    %v707 = vld [vmem:[%s5 + $0x30] sm:$0xff]
    %v708 = vld [vmem:[%s5 + $0x38] sm:$0xff]
    %v709 = vld [vmem:[%s5 + $0x40] sm:$0xff]
    %v710 = vld [vmem:[%s5 + $0x48] sm:$0xff]
    %v711 = vld [vmem:[%s5 + $0x50] sm:$0xff]
    %v712 = vld [vmem:[%s5 + $0x58] sm:$0xff]
    %v713 = vld [vmem:[%s5 + $0x60] sm:$0xff]
    %v714 = vld [vmem:[%s5 + $0x68] sm:$0xff]
    %v715 = vld [vmem:[%s5 + $0x70] sm:$0xff]
    %v716 = vld [vmem:[%s5 + $0x78] sm:$0xff]
    %v717 = vld [vmem:[%s5 + $0x80] sm:$0xff]
    %v718 = vld [vmem:[%s5 + $0x88] sm:$0xff]
    %v719 = vld [vmem:[%s5 + $0x90] sm:$0xff]
    %v720 = vld [vmem:[%s5 + $0x98] sm:$0xff]
    %v721 = vld [vmem:[%s5 + $0xa0] sm:$0xff]
    %v722 = vld [vmem:[%s5 + $0xa8] sm:$0xff]
    %v723 = vld [vmem:[%s5 + $0xb0] sm:$0xff]
    %v724 = vld [vmem:[%s5 + $0xb8] sm:$0xff]
    %vm725 = vcmask 392192
    %v727 = vsel %vm725, %v700, 0
    %729 = vmatpush.msra.mxu0 0.0
    %730 = vmatpush.msra.mxu0 0.0
    %731 = vmatpush.msra.mxu0 0.0
    %732 = vmatpush.msra.mxu0 0.0
    %733 = vmatpush.msra.mxu0 0.0
    %734 = vmatpush.msra.mxu0 0.0
    %735 = vmatpush.msra.mxu0 0.0
    %736 = vmatpush.msra.mxu0 0.0
    %737 = vmatpush.msra.mxu0 0.0
    %738 = vmatpush.msra.mxu0 0.0
    %739 = vmatpush.msra.mxu0 %v721
    %740 = vmatpush.msra.mxu0 %v717
    %741 = vmatpush.msra.mxu0 %v713
    %742 = vmatpush.msra.mxu0 %v709
    %743 = vmatpush.msra.mxu0 %v705
    %744 = vmatpush.msra.mxu0 %v701
    %745 = vmatmul.f32.gmra.mxu0 %v727
    %v746 = vpop.f32.mrf.mxu0
    %v747 = vadd.f32 0.0, %v746
    %748 = vdwg.mxu0
    %749 = vmatpush.msra.mxu0 0.0
    %750 = vmatpush.msra.mxu0 0.0
    %751 = vmatpush.msra.mxu0 0.0
    %752 = vmatpush.msra.mxu0 0.0
    %753 = vmatpush.msra.mxu0 0.0
    %754 = vmatpush.msra.mxu0 0.0
    %755 = vmatpush.msra.mxu0 0.0
    %756 = vmatpush.msra.mxu0 0.0
    %757 = vmatpush.msra.mxu0 0.0
    %758 = vmatpush.msra.mxu0 0.0
    %759 = vmatpush.msra.mxu0 %v722
    %760 = vmatpush.msra.mxu0 %v718
    %761 = vmatpush.msra.mxu0 %v714
    %762 = vmatpush.msra.mxu0 %v710
    %763 = vmatpush.msra.mxu0 %v706
    %764 = vmatpush.msra.mxu0 %v702
    %765 = vmatmul.f32.gmra.mxu0 %v727
    %v766 = vpop.f32.mrf.mxu0
    %v767 = vadd.f32 0.0, %v766
    %768 = vdwg.mxu0
    %769 = vmatpush.msra.mxu0 0.0
    %770 = vmatpush.msra.mxu0 0.0
    %771 = vmatpush.msra.mxu0 0.0
    %772 = vmatpush.msra.mxu0 0.0
    %773 = vmatpush.msra.mxu0 0.0
    %774 = vmatpush.msra.mxu0 0.0
    %775 = vmatpush.msra.mxu0 0.0
    %776 = vmatpush.msra.mxu0 0.0
    %777 = vmatpush.msra.mxu0 0.0
    %778 = vmatpush.msra.mxu0 0.0
    %779 = vmatpush.msra.mxu0 %v723
    %780 = vmatpush.msra.mxu0 %v719
    %781 = vmatpush.msra.mxu0 %v715
    %782 = vmatpush.msra.mxu0 %v711
    %783 = vmatpush.msra.mxu0 %v707
    %784 = vmatpush.msra.mxu0 %v703
    %785 = vmatmul.f32.gmra.mxu0 %v727
    %v786 = vpop.f32.mrf.mxu0
    %v787 = vadd.f32 0.0, %v786
    %788 = vdwg.mxu0
    %789 = vmatpush.msra.mxu0 0.0
    %790 = vmatpush.msra.mxu0 0.0
    %791 = vmatpush.msra.mxu0 0.0
    %792 = vmatpush.msra.mxu0 0.0
    %793 = vmatpush.msra.mxu0 0.0
    %794 = vmatpush.msra.mxu0 0.0
    %795 = vmatpush.msra.mxu0 0.0
    %796 = vmatpush.msra.mxu0 0.0
    %797 = vmatpush.msra.mxu0 0.0
    %798 = vmatpush.msra.mxu0 0.0
    %799 = vmatpush.msra.mxu0 %v724
    %800 = vmatpush.msra.mxu0 %v720
    %801 = vmatpush.msra.mxu0 %v716
    %802 = vmatpush.msra.mxu0 %v712
    %803 = vmatpush.msra.mxu0 %v708
    %804 = vmatpush.msra.mxu0 %v704
    %805 = vmatmul.f32.gmra.mxu0 %v727
    %v806 = vpop.f32.mrf.mxu0
    %v807 = vadd.f32 0.0, %v806
    %808 = vdwg.mxu0
    %v810 = vrot.slane %v767, 1
    %v812 = vadd.f32 %v747, %v810
    %v814 = vrot.slane %v787, 2
    %v816 = vadd.f32 %v812, %v814
    %v818 = vrot.slane %v807, 3
    %v820 = vadd.f32 %v816, %v818
    %v821 = vld [vmem:[%s6] sm:$0x1]
    %v822 = vadd.f32 %v820, %v821
    %v823 = vmax.f32 %v822, 0.0
    %v824 = vld [vmem:[%s7] sm:$0xff]
    %v825 = vld [vmem:[%s7 + $0x8] sm:$0xff]
    %v826 = vld [vmem:[%s7 + $0x10] sm:$0xff]
    %v827 = vld [vmem:[%s7 + $0x18] sm:$0xff]
    %v828 = vld [vmem:[%s7 + $0x20] sm:$0xff]
    %v829 = vld [vmem:[%s7 + $0x28] sm:$0xff]
    %v830 = vld [vmem:[%s7 + $0x30] sm:$0xff]
    %v831 = vld [vmem:[%s7 + $0x38] sm:$0xff]
    %v832 = vld [vmem:[%s7 + $0x40] sm:$0xff]
    %v833 = vld [vmem:[%s7 + $0x48] sm:$0xff]
    %v834 = vld [vmem:[%s7 + $0x50] sm:$0xff]
    %v835 = vld [vmem:[%s7 + $0x58] sm:$0xff]
    %v836 = vld [vmem:[%s7 + $0x60] sm:$0xff]
    %v837 = vld [vmem:[%s7 + $0x68] sm:$0xff]
    %v838 = vld [vmem:[%s7 + $0x70] sm:$0xff]
    %v839 = vld [vmem:[%s7 + $0x78] sm:$0xff]
    %v840 = vld [vmem:[%s8] sm:$0x1]
    %841 = vmatpush.msra.mxu0 %v839
    %842 = vmatpush.msra.mxu0 %v838
    %843 = vmatpush.msra.mxu0 %v837
    %844 = vmatpush.msra.mxu0 %v836
    %845 = vmatpush.msra.mxu0 %v835
    %846 = vmatpush.msra.mxu0 %v834
    %847 = vmatpush.msra.mxu0 %v833
    %848 = vmatpush.msra.mxu0 %v832
    %849 = vmatpush.msra.mxu0 %v831
    %850 = vmatpush.msra.mxu0 %v830
    %851 = vmatpush.msra.mxu0 %v829
    %852 = vmatpush.msra.mxu0 %v828
    %853 = vmatpush.msra.mxu0 %v827
    %854 = vmatpush.msra.mxu0 %v826
    %855 = vmatpush.msra.mxu0 %v825
    %856 = vmatpush.msra.mxu0 %v824
    %857 = vmatmul.f32.gmra.mxu0 %v823
    %v858 = vpop.f32.mrf.mxu0
    %v859 = vadd.f32 %v840, %v858
    %860 = vdwg.mxu0
    %vm861 = vcmask 57344
    %862 = vst.msk [vmem:[#allocation3] sm:$0x1] %vm861, %v859
    %s863 = scalar_lea.vmem [#allocation2], 9
    %v864 = vld [vmem:[%s863] ss:$2 sm:$0xf]
    %v865 = vld [vmem:[%s3] sm:$0xff]
    %v866 = vld [vmem:[%s3 + $0x8] sm:$0xff]
    %v867 = vld [vmem:[%s3 + $0x10] sm:$0xff]
    %v868 = vld [vmem:[%s3 + $0x18] sm:$0xff]
    %v869 = vld [vmem:[%s3 + $0x20] sm:$0xff]
    %v870 = vld [vmem:[%s3 + $0x28] sm:$0xff]
    %v871 = vld [vmem:[%s3 + $0x30] sm:$0xff]
    %v872 = vld [vmem:[%s3 + $0x38] sm:$0xff]
    %v873 = vld [vmem:[%s3 + $0x40] sm:$0xff]
    %v874 = vld [vmem:[%s3 + $0x48] sm:$0xff]
    %v875 = vld [vmem:[%s3 + $0x50] sm:$0xff]
    %v876 = vld [vmem:[%s3 + $0x58] sm:$0xff]
    %v877 = vld [vmem:[%s3 + $0x60] sm:$0xff]
    %v878 = vld [vmem:[%s3 + $0x68] sm:$0xff]
    %v879 = vld [vmem:[%s3 + $0x70] sm:$0xff]
    %v880 = vld [vmem:[%s3 + $0x78] sm:$0xff]
    %s881 = scalar_lea.vmem [#allocation2], 10
    %v882 = vld [vmem:[%s881] ss:$2 sm:$0xf]
    %v883 = vld [vmem:[%s598] sm:$0xff]
    %v884 = vld [vmem:[%s598 + $0x8] sm:$0xff]
    %v885 = vld [vmem:[%s598 + $0x10] sm:$0xff]
    %v886 = vld [vmem:[%s598 + $0x18] sm:$0xff]
    %v887 = vld [vmem:[%s598 + $0x20] sm:$0xff]
    %v888 = vld [vmem:[%s598 + $0x28] sm:$0xff]
    %v889 = vld [vmem:[%s598 + $0x30] sm:$0xff]
    %v890 = vld [vmem:[%s598 + $0x38] sm:$0xff]
    %v891 = vld [vmem:[%s598 + $0x40] sm:$0xff]
    %v892 = vld [vmem:[%s598 + $0x48] sm:$0xff]
    %v893 = vld [vmem:[%s598 + $0x50] sm:$0xff]
    %v894 = vld [vmem:[%s598 + $0x58] sm:$0xff]
    %v895 = vld [vmem:[%s598 + $0x60] sm:$0xff]
    %v896 = vld [vmem:[%s598 + $0x68] sm:$0xff]
    %v897 = vld [vmem:[%s598 + $0x70] sm:$0xff]
    %v898 = vld [vmem:[%s598 + $0x78] sm:$0xff]
    %899 = vmatpush.msra.mxu0 %v898
    %900 = vmatpush.msra.mxu0 %v897
    %901 = vmatpush.msra.mxu0 %v896
    %902 = vmatpush.msra.mxu0 %v895
    %903 = vmatpush.msra.mxu0 %v894
    %904 = vmatpush.msra.mxu0 %v893
    %905 = vmatpush.msra.mxu0 %v892
    %906 = vmatpush.msra.mxu0 %v891
    %907 = vmatpush.msra.mxu0 %v890
    %908 = vmatpush.msra.mxu0 %v889
    %909 = vmatpush.msra.mxu0 %v888
    %910 = vmatpush.msra.mxu0 %v887
    %911 = vmatpush.msra.mxu0 %v886
    %912 = vmatpush.msra.mxu0 %v885
    %913 = vmatpush.msra.mxu0 %v884
    %914 = vmatpush.msra.mxu0 %v883
    %915 = vmatmul.f32.gmra.mxu0 %v882
    %v916 = vpop.f32.mrf.mxu0
    %v917 = vadd.f32 0.0, %v916
    %918 = vdwg.mxu0
    %919 = vmatpush.msra.mxu0 %v880
    %920 = vmatpush.msra.mxu0 %v879
    %921 = vmatpush.msra.mxu0 %v878
    %922 = vmatpush.msra.mxu0 %v877
    %923 = vmatpush.msra.mxu0 %v876
    %924 = vmatpush.msra.mxu0 %v875
    %925 = vmatpush.msra.mxu0 %v874
    %926 = vmatpush.msra.mxu0 %v873
    %927 = vmatpush.msra.mxu0 %v872
    %928 = vmatpush.msra.mxu0 %v871
    %929 = vmatpush.msra.mxu0 %v870
    %930 = vmatpush.msra.mxu0 %v869
    %931 = vmatpush.msra.mxu0 %v868
    %932 = vmatpush.msra.mxu0 %v867
    %933 = vmatpush.msra.mxu0 %v866
    %934 = vmatpush.msra.mxu0 %v865
    %935 = vmatmul.f32.gmra.mxu0 %v864
    %v936 = vpop.f32.mrf.mxu0
    %v937 = vadd.f32 %v917, %v936
    %938 = vdwg.mxu0
    %s939 = scalar_lea.vmem [#allocation2], 11
    %v940 = vld [vmem:[%s939] ss:$2 sm:$0xf]
    %v941 = vld [vmem:[%s657] sm:$0xff]
    %v942 = vld [vmem:[%s657 + $0x8] sm:$0xff]
    %v943 = vld [vmem:[%s657 + $0x10] sm:$0xff]
    %v944 = vld [vmem:[%s657 + $0x18] sm:$0xff]
    %v945 = vld [vmem:[%s657 + $0x20] sm:$0xff]
    %v946 = vld [vmem:[%s657 + $0x28] sm:$0xff]
    %v947 = vld [vmem:[%s657 + $0x30] sm:$0xff]
    %v948 = vld [vmem:[%s657 + $0x38] sm:$0xff]
    %v949 = vld [vmem:[%s657 + $0x40] sm:$0xff]
    %v950 = vld [vmem:[%s657 + $0x48] sm:$0xff]
    %v951 = vld [vmem:[%s657 + $0x50] sm:$0xff]
    %v952 = vld [vmem:[%s657 + $0x58] sm:$0xff]
    %v953 = vld [vmem:[%s657 + $0x60] sm:$0xff]
    %v954 = vld [vmem:[%s657 + $0x68] sm:$0xff]
    %v955 = vld [vmem:[%s657 + $0x70] sm:$0xff]
    %v956 = vld [vmem:[%s657 + $0x78] sm:$0xff]
    %957 = vmatpush.msra.mxu0 %v956
    %958 = vmatpush.msra.mxu0 %v955
    %959 = vmatpush.msra.mxu0 %v954
    %960 = vmatpush.msra.mxu0 %v953
    %961 = vmatpush.msra.mxu0 %v952
    %962 = vmatpush.msra.mxu0 %v951
    %963 = vmatpush.msra.mxu0 %v950
    %964 = vmatpush.msra.mxu0 %v949
    %965 = vmatpush.msra.mxu0 %v948
    %966 = vmatpush.msra.mxu0 %v947
    %967 = vmatpush.msra.mxu0 %v946
    %968 = vmatpush.msra.mxu0 %v945
    %969 = vmatpush.msra.mxu0 %v944
    %970 = vmatpush.msra.mxu0 %v943
    %971 = vmatpush.msra.mxu0 %v942
    %972 = vmatpush.msra.mxu0 %v941
    %973 = vmatmul.f32.gmra.mxu0 %v940
    %v974 = vpop.f32.mrf.mxu0
    %v975 = vadd.f32 0.0, %v974
    %976 = vdwg.mxu0
    %v977 = vadd.f32 %v937, %v975
    %v978 = vld [vmem:[%s4] sm:$0x1]
    %v980 = vperm.slane %v978, 0
    %v982 = vadd.f32 %v977, %v980
    %v983 = vmax.f32 %v982, 0.0
    %v984 = vld [vmem:[%s5] sm:$0xff]
    %v985 = vld [vmem:[%s5 + $0x8] sm:$0xff]
    %v986 = vld [vmem:[%s5 + $0x10] sm:$0xff]
    %v987 = vld [vmem:[%s5 + $0x18] sm:$0xff]
    %v988 = vld [vmem:[%s5 + $0x20] sm:$0xff]
    %v989 = vld [vmem:[%s5 + $0x28] sm:$0xff]
    %v990 = vld [vmem:[%s5 + $0x30] sm:$0xff]
    %v991 = vld [vmem:[%s5 + $0x38] sm:$0xff]
    %v992 = vld [vmem:[%s5 + $0x40] sm:$0xff]
    %v993 = vld [vmem:[%s5 + $0x48] sm:$0xff]
    %v994 = vld [vmem:[%s5 + $0x50] sm:$0xff]
    %v995 = vld [vmem:[%s5 + $0x58] sm:$0xff]
    %v996 = vld [vmem:[%s5 + $0x60] sm:$0xff]
    %v997 = vld [vmem:[%s5 + $0x68] sm:$0xff]
    %v998 = vld [vmem:[%s5 + $0x70] sm:$0xff]
    %v999 = vld [vmem:[%s5 + $0x78] sm:$0xff]
    %v1000 = vld [vmem:[%s5 + $0x80] sm:$0xff]
    %v1001 = vld [vmem:[%s5 + $0x88] sm:$0xff]
    %v1002 = vld [vmem:[%s5 + $0x90] sm:$0xff]
    %v1003 = vld [vmem:[%s5 + $0x98] sm:$0xff]
    %v1004 = vld [vmem:[%s5 + $0xa0] sm:$0xff]
    %v1005 = vld [vmem:[%s5 + $0xa8] sm:$0xff]
    %v1006 = vld [vmem:[%s5 + $0xb0] sm:$0xff]
    %v1007 = vld [vmem:[%s5 + $0xb8] sm:$0xff]
    %v1009 = vsel %vm725, %v983, 0
    %1011 = vmatpush.msra.mxu0 0.0
    %1012 = vmatpush.msra.mxu0 0.0
    %1013 = vmatpush.msra.mxu0 0.0
    %1014 = vmatpush.msra.mxu0 0.0
    %1015 = vmatpush.msra.mxu0 0.0
    %1016 = vmatpush.msra.mxu0 0.0
    %1017 = vmatpush.msra.mxu0 0.0
    %1018 = vmatpush.msra.mxu0 0.0
    %1019 = vmatpush.msra.mxu0 0.0
    %1020 = vmatpush.msra.mxu0 0.0
    %1021 = vmatpush.msra.mxu0 %v1004
    %1022 = vmatpush.msra.mxu0 %v1000
    %1023 = vmatpush.msra.mxu0 %v996
    %1024 = vmatpush.msra.mxu0 %v992
    %1025 = vmatpush.msra.mxu0 %v988
    %1026 = vmatpush.msra.mxu0 %v984
    %1027 = vmatmul.f32.gmra.mxu0 %v1009
    %v1028 = vpop.f32.mrf.mxu0
    %v1029 = vadd.f32 0.0, %v1028
    %1030 = vdwg.mxu0
    %1031 = vmatpush.msra.mxu0 0.0
    %1032 = vmatpush.msra.mxu0 0.0
    %1033 = vmatpush.msra.mxu0 0.0
    %1034 = vmatpush.msra.mxu0 0.0
    %1035 = vmatpush.msra.mxu0 0.0
    %1036 = vmatpush.msra.mxu0 0.0
    %1037 = vmatpush.msra.mxu0 0.0
    %1038 = vmatpush.msra.mxu0 0.0
    %1039 = vmatpush.msra.mxu0 0.0
    %1040 = vmatpush.msra.mxu0 0.0
    %1041 = vmatpush.msra.mxu0 %v1005
    %1042 = vmatpush.msra.mxu0 %v1001
    %1043 = vmatpush.msra.mxu0 %v997
    %1044 = vmatpush.msra.mxu0 %v993
    %1045 = vmatpush.msra.mxu0 %v989
    %1046 = vmatpush.msra.mxu0 %v985
    %1047 = vmatmul.f32.gmra.mxu0 %v1009
    %v1048 = vpop.f32.mrf.mxu0
    %v1049 = vadd.f32 0.0, %v1048
    %1050 = vdwg.mxu0
    %1051 = vmatpush.msra.mxu0 0.0
    %1052 = vmatpush.msra.mxu0 0.0
    %1053 = vmatpush.msra.mxu0 0.0
    %1054 = vmatpush.msra.mxu0 0.0
    %1055 = vmatpush.msra.mxu0 0.0
    %1056 = vmatpush.msra.mxu0 0.0
    %1057 = vmatpush.msra.mxu0 0.0
    %1058 = vmatpush.msra.mxu0 0.0
    %1059 = vmatpush.msra.mxu0 0.0
    %1060 = vmatpush.msra.mxu0 0.0
    %1061 = vmatpush.msra.mxu0 %v1006
    %1062 = vmatpush.msra.mxu0 %v1002
    %1063 = vmatpush.msra.mxu0 %v998
    %1064 = vmatpush.msra.mxu0 %v994
    %1065 = vmatpush.msra.mxu0 %v990
    %1066 = vmatpush.msra.mxu0 %v986
    %1067 = vmatmul.f32.gmra.mxu0 %v1009
    %v1068 = vpop.f32.mrf.mxu0
    %v1069 = vadd.f32 0.0, %v1068
    %1070 = vdwg.mxu0
    %1071 = vmatpush.msra.mxu0 0.0
    %1072 = vmatpush.msra.mxu0 0.0
    %1073 = vmatpush.msra.mxu0 0.0
    %1074 = vmatpush.msra.mxu0 0.0
    %1075 = vmatpush.msra.mxu0 0.0
    %1076 = vmatpush.msra.mxu0 0.0
    %1077 = vmatpush.msra.mxu0 0.0
    %1078 = vmatpush.msra.mxu0 0.0
    %1079 = vmatpush.msra.mxu0 0.0
    %1080 = vmatpush.msra.mxu0 0.0
    %1081 = vmatpush.msra.mxu0 %v1007
    %1082 = vmatpush.msra.mxu0 %v1003
    %1083 = vmatpush.msra.mxu0 %v999
    %1084 = vmatpush.msra.mxu0 %v995
    %1085 = vmatpush.msra.mxu0 %v991
    %1086 = vmatpush.msra.mxu0 %v987
    %1087 = vmatmul.f32.gmra.mxu0 %v1009
    %v1088 = vpop.f32.mrf.mxu0
    %v1089 = vadd.f32 0.0, %v1088
    %1090 = vdwg.mxu0
    %v1092 = vrot.slane %v1049, 1
    %v1094 = vadd.f32 %v1029, %v1092
    %v1096 = vrot.slane %v1069, 2
    %v1098 = vadd.f32 %v1094, %v1096
    %v1100 = vrot.slane %v1089, 3
    %v1102 = vadd.f32 %v1098, %v1100
    %v1103 = vld [vmem:[%s6] sm:$0x1]
    %v1104 = vadd.f32 %v1102, %v1103
    %v1105 = vmax.f32 %v1104, 0.0
    %v1106 = vld [vmem:[%s7] sm:$0xff]
    %v1107 = vld [vmem:[%s7 + $0x8] sm:$0xff]
    %v1108 = vld [vmem:[%s7 + $0x10] sm:$0xff]
    %v1109 = vld [vmem:[%s7 + $0x18] sm:$0xff]
    %v1110 = vld [vmem:[%s7 + $0x20] sm:$0xff]
    %v1111 = vld [vmem:[%s7 + $0x28] sm:$0xff]
    %v1112 = vld [vmem:[%s7 + $0x30] sm:$0xff]
    %v1113 = vld [vmem:[%s7 + $0x38] sm:$0xff]
    %v1114 = vld [vmem:[%s7 + $0x40] sm:$0xff]
    %v1115 = vld [vmem:[%s7 + $0x48] sm:$0xff]
    %v1116 = vld [vmem:[%s7 + $0x50] sm:$0xff]
    %v1117 = vld [vmem:[%s7 + $0x58] sm:$0xff]
    %v1118 = vld [vmem:[%s7 + $0x60] sm:$0xff]
    %v1119 = vld [vmem:[%s7 + $0x68] sm:$0xff]
    %v1120 = vld [vmem:[%s7 + $0x70] sm:$0xff]
    %v1121 = vld [vmem:[%s7 + $0x78] sm:$0xff]
    %v1122 = vld [vmem:[%s8] sm:$0x1]
    %1123 = vmatpush.msra.mxu0 %v1121
    %1124 = vmatpush.msra.mxu0 %v1120
    %1125 = vmatpush.msra.mxu0 %v1119
    %1126 = vmatpush.msra.mxu0 %v1118
    %1127 = vmatpush.msra.mxu0 %v1117
    %1128 = vmatpush.msra.mxu0 %v1116
    %1129 = vmatpush.msra.mxu0 %v1115
    %1130 = vmatpush.msra.mxu0 %v1114
    %1131 = vmatpush.msra.mxu0 %v1113
    %1132 = vmatpush.msra.mxu0 %v1112
    %1133 = vmatpush.msra.mxu0 %v1111
    %1134 = vmatpush.msra.mxu0 %v1110
    %1135 = vmatpush.msra.mxu0 %v1109
    %1136 = vmatpush.msra.mxu0 %v1108
    %1137 = vmatpush.msra.mxu0 %v1107
    %1138 = vmatpush.msra.mxu0 %v1106
    %1139 = vmatmul.f32.gmra.mxu0 %v1105
    %v1140 = vpop.f32.mrf.mxu0
    %v1141 = vadd.f32 %v1122, %v1140
    %1142 = vdwg.mxu0
    %1143 = vst.msk [vmem:[#allocation3 + $0x1] sm:$0x1] %vm861, %v1141
    // Predicated region
    $region38: #{net_forward.1} parent=1 // pred_check
      _
    $region39: #{net_forward.1} parent=1 // pred_check_branch
      %1145 = sbr.rel (0) target = $region41
    $region40: #{net_forward.1} parent=1 // pred_region
      %1147 = vsyncadd [#allocation4], 0
      %s1149 = sshll.u32 [#allocation3], 4
      %s1150 = int_to_ptr.vmem [resolvable:$true] %s1149
      %s1151 = sshll.u32 %s9, 4
      %s1152 = int_to_ptr.hbm [resolvable:$true] %s1151
      %1154 = dma.vmem_to_hbm [thread:$0]  %s1150, 32, %s1152, [#allocation4]
    $region41: #{net_forward.1} parent=1 // pred_fallthru
      _
    // Predicated region
    $region42: #{net_forward.1} parent=1 // pred_check
      _
    $region43: #{net_forward.1} parent=1 // pred_check_branch
      %1156 = sbr.rel (0) target = $region45
    $region44: #{net_forward.1} parent=1 // pred_region
      %1158 = dma.done [#allocation4], 32
    $region45: #{net_forward.1} parent=1 // pred_fallthru
      _
    %1159 = vsyncpa [#allocation4], 1

</llo_original>
